<compile_context>
chip_gen: v7x
topology: tpu7x:2x2x1
jax: 0.10.0
libtpu: 0.0.40
codegen_flags: <defaults>
</compile_context>

<pallas_src>
import functools

import jax
import jax.numpy as jnp
from jax import lax
from jax.experimental import pallas as pl
from jax.experimental.pallas import tpu as pltpu


def _zero_fill_shift(v, s):
    """v: (1, L). Returns u with u[:, p] = v[:, p + s] if 0 <= p+s < L else 0."""
    L = v.shape[-1]
    if s == 0:
        return v
    if abs(s) >= L:
        return jnp.zeros_like(v)
    z = jnp.zeros((1, abs(s)), v.dtype)
    if s > 0:
        return jnp.concatenate([v[:, s:], z], axis=-1)
    return jnp.concatenate([z, v[:, : L + s]], axis=-1)


def _spatial_attention_kernel(w_ref, x_ref, o_ref, sum_sc, max_sc,
                              *, C, H, W, K, needs_mask):
    """Grid = (batch n, channel-block cb); accumulate over cb, finalize last."""
    HW = H * W
    pad = K // 2
    cb = pl.program_id(1)
    n_cb = pl.num_programs(1)
    c_rows = x_ref.shape[0]            # channel rows in this block (static)
    n_full = c_rows // 8
    rem = c_rows % 8                   # nonzero only when c_rows == C (no mask)

    @pl.when(cb == 0)
    def _init():
        sum_sc[...] = jnp.zeros_like(sum_sc)
        max_sc[...] = jnp.full(max_sc.shape, -jnp.inf, dtype=jnp.float32)

    # ---- per-step channel partial reduction: element-wise 8-row slabs ------
    if needs_mask:
        ch_iota = jax.lax.broadcasted_iota(jnp.int32, (8, HW), 0)   # hoisted
        ch_base = cb * c_rows

    def _accumulate(off, slab):
        # slab: (8, HW) f32 -- only this slab is ever upcast to f32.
        if needs_mask:
            valid = (ch_base + off + ch_iota) < C
            sum_sc[...] = sum_sc[...] + jnp.where(valid, slab, 0.0)
            max_sc[...] = jnp.maximum(max_sc[...],
                                      jnp.where(valid, slab, -jnp.inf))
        else:
            sum_sc[...] = sum_sc[...] + slab
            max_sc[...] = jnp.maximum(max_sc[...], slab)

    if n_full > 0:
        def _slab_body(r, carry):
            off = pl.multiple_of(r * 8, 8)
            _accumulate(off, x_ref[pl.ds(off, 8), :].astype(jnp.float32))
            return carry
        lax.fori_loop(0, n_full, _slab_body, 0, unroll=(n_full <= 8))

    if rem:
        # Remainder rows (< 8; only when the block is the full channel
        # extent): one small cross-sublane reduce into row 0.
        tail = x_ref[n_full * 8:, :].astype(jnp.float32)
        sum_sc[0:1, :] = sum_sc[0:1, :] + jnp.sum(tail, axis=0, keepdims=True)
        max_sc[0:1, :] = jnp.maximum(max_sc[0:1, :],
                                     jnp.max(tail, axis=0, keepdims=True))

    # ---- finalize: single 8->1 reduce, separable 7x7 conv, sigmoid ---------
    @pl.when(cb == n_cb - 1)
    def _finalize():
        avg = jnp.sum(sum_sc[...], axis=0, keepdims=True) * jnp.float32(1.0 / C)
        mx = jnp.max(max_sc[...], axis=0, keepdims=True)

        # Column indices generated in-kernel (no extra HBM input).
        col = jax.lax.broadcasted_iota(jnp.int32, (1, HW), 1) % W

        # 2 x K horizontally shifted + column-masked maps (exact zero pad).
        hmaps = []
        for feat in (avg, mx):
            maps_j = []
            for j in range(K):
                dj = j - pad
                shifted = _zero_fill_shift(feat, dj)
                if dj != 0:
                    shifted = jnp.where((col >= -dj) & (col < W - dj),
                                        shifted, 0.0)
                maps_j.append(shifted)
            hmaps.append(maps_j)

        # 98 scalar FMAs + 2*K whole-row vertical shifts.  Vertical overruns
        # fall outside [0, HW), so the zero-fill shift realizes zero padding.
        acc = jnp.zeros((1, HW), jnp.float32)
        for ci in range(2):
            for i in range(K):
                di = i - pad
                row = jnp.zeros((1, HW), jnp.float32)
                for j in range(K):
                    w = w_ref[ci * K * K + i * K + j]      # SMEM scalar read
                    row = row + w * hmaps[ci][j]
                acc = acc + _zero_fill_shift(row, di * W)

        out = pl.reciprocal(1.0 + jnp.exp(-acc))           # sigmoid
        o_ref[...] = out.astype(o_ref.dtype)


def spatial_attention(x, conv_w, *, block_bytes=8 * 1024 * 1024,
                      vmem_limit_bytes=48 * 1024 * 1024):
    """x: (N, C, H, W); conv_w: (1, 2, K, K) -> (N, 1, H, W)."""
    assert x.ndim == 4
    N, C, H, W = x.shape
    HW = H * W
    K = conv_w.shape[-1]
    assert conv_w.shape == (1, 2, K, K) and K % 2 == 1

    # Lane-dense views: free reshapes, no HBM copies / padding.
    x3 = x.reshape(N, C, HW)
    w_flat = conv_w.reshape(-1).astype(jnp.float32)          # (2*K*K,) -> SMEM

    # Channel block: cdiv-based blocking.  Whole-C block when it fits the byte
    # budget (no masking needed); otherwise the largest multiple-of-8 row
    # count that fits, with the remainder block masked in-kernel.  The budget
    # is on raw input bytes because only an (8, HW) slab is upcast to f32.
    itemsize = x.dtype.itemsize
    row_bytes = HW * itemsize
    if C * row_bytes <= block_bytes:
        c_blk = C
        needs_mask = False
    else:
        c_blk = max(8, min(C, block_bytes // row_bytes) // 8 * 8)
        needs_mask = (C % c_blk) != 0
    n_cb = pl.cdiv(C, c_blk)
    # TODO(synk): H*W is not tiled (a spatial split needs a 3-row conv halo);
    # for very large H*W the minimum 8-row block may exceed the budget, so the
    # VMEM limit below is raised to cover it.

    approx_need = (2 * c_blk * row_bytes      # double-buffered x blocks
                   + 2 * 8 * HW * 4           # (8, HW) sum/max accumulators
                   + 24 * HW * 4)             # finalize temporaries + output
    vmem_limit = int(max(vmem_limit_bytes, 2 * approx_need))

    kernel = functools.partial(_spatial_attention_kernel, C=C, H=H, W=W, K=K,
                               needs_mask=needs_mask)

    out3 = pl.pallas_call(
        kernel,
        out_shape=jax.ShapeDtypeStruct((N, 1, HW), x.dtype),
        grid_spec=pltpu.PrefetchScalarGridSpec(
            num_scalar_prefetch=0,
            grid=(N, n_cb),
            in_specs=[
                # conv weights: whole array in SMEM (scalar reads in kernel)
                pl.BlockSpec(memory_space=pltpu.MemorySpace.SMEM),
                # lane-dense x block: (c_blk, HW) per (batch, channel-block)
                pl.BlockSpec((None, c_blk, HW), lambda n, c: (n, c, 0)),
            ],
            out_specs=pl.BlockSpec((None, 1, HW), lambda n, c: (n, 0, 0)),
            scratch_shapes=[
                pltpu.VMEM((8, HW), jnp.float32),   # channel-sum accumulator
                pltpu.VMEM((8, HW), jnp.float32),   # channel-max accumulator
            ],
        ),
        compiler_params=pltpu.CompilerParams(
            dimension_semantics=("parallel", "arbitrary"),
            vmem_limit_bytes=vmem_limit,
        ),
    )(w_flat, x3)

    return out3.reshape(N, 1, H, W)


def _reference(x, conv_w):
    """Pure-JAX reference with the same math as the PyTorch module."""
    N, C, H, W = x.shape
    K = conv_w.shape[-1]
    pad = K // 2
    xf = x.astype(jnp.float32)
    avg = jnp.mean(xf, axis=1, keepdims=True)
    mx = jnp.max(xf, axis=1, keepdims=True)
    feat = jnp.concatenate([avg, mx], axis=1)                # (N, 2, H, W)
    featp = jnp.pad(feat, ((0, 0), (0, 0), (pad, pad), (pad, pad)))
    conv = jnp.zeros((N, 1, H, W), jnp.float32)
    for c in range(2):
        for i in range(K):
            for j in range(K):
                conv = conv + conv_w[0, c, i, j] * featp[:, c:c + 1,
                                                         i:i + H, j:j + W]
    return jax.nn.sigmoid(conv)


if __name__ == "__main__":
    key = jax.random.PRNGKey(0)
    kx, kw, kx2 = jax.random.split(key, 3)

    # Main case: NCHW input (2, 4, 16, 16), 7x7 conv weight (2 -> 1).
    x = jax.random.normal(kx, (2, 4, 16, 16), dtype=jnp.float32)
    conv_w = 0.1 * jax.random.normal(kw, (1, 2, 7, 7), dtype=jnp.float32)

    y = jax.block_until_ready(spatial_attention(x, conv_w))
    assert y.shape == (2, 1, 16, 16) and y.dtype == x.dtype
    err = float(jnp.max(jnp.abs(y.astype(jnp.float32) - _reference(x, conv_w))))
    assert err < 1e-4, f"max abs err {err}"

    # Also exercise the blocked / masked / fori-loop reduction path by forcing
    # a tiny channel-block byte budget (c_blk=72 over C=80 -> 2 grid steps,
    # remainder block masked in-kernel).
    x2 = jax.random.normal(kx2, (1, 80, 8, 8), dtype=jnp.float32)
    y2 = jax.block_until_ready(spatial_attention(x2, conv_w,
                                                 block_bytes=19_000))
    err2 = float(jnp.max(jnp.abs(y2.astype(jnp.float32)
                                 - _reference(x2, conv_w))))
    assert err2 < 1e-4, f"max abs err (blocked path) {err2}"

    print("KERNEL_OK")
</pallas_src>

<mosaic_0001>
module attributes {stable_mosaic.version = 11 : i64} {
  func.func @_spatial_attention_kernel(%arg0: i32, %arg1: i32, %arg2: memref<98xf32, #tpu.memory_space<smem>>, %arg3: memref<1x4x256xf32, #tpu.memory_space<vmem>>, %arg4: memref<1x1x256xf32, #tpu.memory_space<vmem>>, %arg5: memref<8x256xf32, #tpu.memory_space<vmem>>, %arg6: memref<8x256xf32, #tpu.memory_space<vmem>>) attributes {dimension_semantics = [#tpu.dimension_semantics<parallel>, #tpu.dimension_semantics<arbitrary>], iteration_bounds = array<i64: 2, 1>, scalar_prefetch = 0 : i64, scratch_operands = 2 : i64, tpu.core_type = #tpu.core_type<tc>, window_params = [{transform_indices = @transform_0, window_bounds = array<i64: 98>}, {transform_indices = @transform_1, window_bounds = array<i64: 1, 4, 256>}, {transform_indices = @transform_2, window_bounds = array<i64: 1, 1, 256>}]} {
    %c0_i32 = arith.constant 0 : i32
    %0 = arith.cmpi eq, %arg1, %c0_i32 : i32
    %1 = arith.extui %0 : i1 to i32
    %c0_i32_0 = arith.constant 0 : i32
    %2 = arith.cmpi ne, %1, %c0_i32_0 : i32
    scf.if %2 {
      %cst_14 = arith.constant 0.000000e+00 : f32
      %18 = vector.broadcast %cst_14 : f32 to vector<8x256xf32>
      %c0_15 = arith.constant 0 : index
      %c0_16 = arith.constant 0 : index
      %19 = vector.load %arg5[%c0_15, %c0_16] : memref<8x256xf32, #tpu.memory_space<vmem>>, vector<8x256xf32>
      tpu.vector_store %arg5[%c0_15, %c0_16], %18 {strides = array<i32>} : memref<8x256xf32, #tpu.memory_space<vmem>>, vector<8x256xf32>,
      %cst_17 = arith.constant 0xFF800000 : f32
      %20 = vector.broadcast %cst_17 : f32 to vector<8x256xf32>
      %c0_18 = arith.constant 0 : index
      %c0_19 = arith.constant 0 : index
      %21 = vector.load %arg6[%c0_18, %c0_19] : memref<8x256xf32, #tpu.memory_space<vmem>>, vector<8x256xf32>
      tpu.vector_store %arg6[%c0_18, %c0_19], %20 {strides = array<i32>} : memref<8x256xf32, #tpu.memory_space<vmem>>, vector<8x256xf32>,
    } else {
    }
    %c0 = arith.constant 0 : index
    %c0_1 = arith.constant 0 : index
    %c0_2 = arith.constant 0 : index
    %3 = vector.load %arg3[%c0, %c0_1, %c0_2] : memref<1x4x256xf32, #tpu.memory_space<vmem>>, vector<1x4x256xf32>
    %4 = vector.shape_cast %3 : vector<1x4x256xf32> to vector<4x256xf32>
    %c0_3 = arith.constant 0 : index
    %c0_4 = arith.constant 0 : index
    %5 = vector.load %arg5[%c0_3, %c0_4] : memref<8x256xf32, #tpu.memory_space<vmem>>, vector<1x256xf32>
    %cst = arith.constant dense<0.000000e+00> : vector<256xf32>
    %6 = vector.multi_reduction <add>, %4, %cst [0] : vector<4x256xf32> to vector<256xf32>
    %7 = vector.shape_cast %6 : vector<256xf32> to vector<1x256xf32>
    %8 = arith.addf %5, %7 : vector<1x256xf32>
    %c0_5 = arith.constant 0 : index
    %c0_6 = arith.constant 0 : index
    %9 = vector.load %arg5[%c0_5, %c0_6] : memref<8x256xf32, #tpu.memory_space<vmem>>, vector<1x256xf32>
    tpu.vector_store %arg5[%c0_5, %c0_6], %8 {strides = array<i32>} : memref<8x256xf32, #tpu.memory_space<vmem>>, vector<1x256xf32>,
    %c0_7 = arith.constant 0 : index
    %c0_8 = arith.constant 0 : index
    %10 = vector.load %arg6[%c0_7, %c0_8] : memref<8x256xf32, #tpu.memory_space<vmem>>, vector<1x256xf32>
    %cst_9 = arith.constant dense<0xFF800000> : vector<256xf32>
    %11 = vector.multi_reduction <maximumf>, %4, %cst_9 [0] : vector<4x256xf32> to vector<256xf32>
    %12 = vector.shape_cast %11 : vector<256xf32> to vector<1x256xf32>
    %13 = arith.maximumf %10, %12 : vector<1x256xf32>
    %c0_10 = arith.constant 0 : index
    %c0_11 = arith.constant 0 : index
    %14 = vector.load %arg6[%c0_10, %c0_11] : memref<8x256xf32, #tpu.memory_space<vmem>>, vector<1x256xf32>
    tpu.vector_store %arg6[%c0_10, %c0_11], %13 {strides = array<i32>} : memref<8x256xf32, #tpu.memory_space<vmem>>, vector<1x256xf32>,
    %c0_i32_12 = arith.constant 0 : i32
    %15 = arith.cmpi eq, %arg1, %c0_i32_12 : i32
    %16 = arith.extui %15 : i1 to i32
    %c0_i32_13 = arith.constant 0 : i32
    %17 = arith.cmpi ne, %16, %c0_i32_13 : i32
    scf.if %17 {
      %c0_14 = arith.constant 0 : index
      %c0_15 = arith.constant 0 : index
      %18 = vector.load %arg5[%c0_14, %c0_15] : memref<8x256xf32, #tpu.memory_space<vmem>>, vector<8x256xf32>
      %cst_16 = arith.constant dense<0.000000e+00> : vector<256xf32>
      %19 = vector.multi_reduction <add>, %18, %cst_16 [0] : vector<8x256xf32> to vector<256xf32>
      %20 = vector.shape_cast %19 : vector<256xf32> to vector<1x256xf32>
      %cst_17 = arith.constant 2.500000e-01 : f32
      %21 = vector.broadcast %cst_17 : f32 to vector<1x256xf32>
      %22 = arith.mulf %20, %21 : vector<1x256xf32>
      %c0_18 = arith.constant 0 : index
      %c0_19 = arith.constant 0 : index
      %23 = vector.load %arg6[%c0_18, %c0_19] : memref<8x256xf32, #tpu.memory_space<vmem>>, vector<8x256xf32>
      %cst_20 = arith.constant dense<0xFF800000> : vector<256xf32>
      %24 = vector.multi_reduction <maximumf>, %23, %cst_20 [0] : vector<8x256xf32> to vector<256xf32>
      %25 = vector.shape_cast %24 : vector<256xf32> to vector<1x256xf32>
      %26 = tpu.iota {dimensions = array<i32: 1>} : vector<1x256xi32>
      %c16_i32 = arith.constant 16 : i32
      %c0_i32_21 = arith.constant 0 : i32
      %27 = arith.cmpi eq, %c16_i32, %c0_i32_21 : i32
      %c1_i32 = arith.constant 1 : i32
      %28 = arith.select %27, %c1_i32, %c16_i32 : i32
      %29 = vector.broadcast %28 : i32 to vector<1x256xi32>
      %30 = arith.remsi %26, %29 : vector<1x256xi32>
      %c0_i32_22 = arith.constant 0 : i32
      %31 = vector.broadcast %c0_i32_22 : i32 to vector<1x256xi32>
      %32 = arith.cmpi ne, %30, %31 : vector<1x256xi32>
      %c0_i32_23 = arith.constant 0 : i32
      %33 = vector.broadcast %c0_i32_23 : i32 to vector<1x256xi32>
      %34 = arith.cmpi slt, %30, %33 : vector<1x256xi32>
      %c0_i32_24 = arith.constant 0 : i32
      %35 = arith.cmpi slt, %28, %c0_i32_24 : i32
      %36 = vector.broadcast %35 : i1 to vector<1x256xi1>
      %37 = vector.broadcast %36 : vector<1x256xi1> to vector<1x256xi1>
      %38 = arith.xori %34, %37 : vector<1x256xi1>
      %39 = arith.andi %38, %32 : vector<1x256xi1>
      %40 = vector.broadcast %28 : i32 to vector<1x256xi32>
      %41 = arith.addi %30, %40 : vector<1x256xi32>
      %42 = arith.select %39, %41, %30 : vector<1x256xi1>, vector<1x256xi32>
      %cst_25 = arith.constant 0.000000e+00 : f32
      %43 = vector.broadcast %cst_25 : f32 to vector<1x3xf32>
      %44 = vector.extract_strided_slice %22 {offsets = [0, 0], sizes = [1, 253], strides = [1, 1]} : vector<1x256xf32> to vector<1x253xf32>
      %45 = tpu.concatenate %43, %44 in 1 : vector<1x3xf32>, vector<1x253xf32> -> vector<1x256xf32>
      %c3_i32 = arith.constant 3 : i32
      %46 = vector.broadcast %c3_i32 : i32 to vector<1x256xi32>
      %47 = arith.cmpi sge, %42, %46 : vector<1x256xi32>
      %c19_i32 = arith.constant 19 : i32
      %48 = vector.broadcast %c19_i32 : i32 to vector<1x256xi32>
      %49 = arith.cmpi slt, %42, %48 : vector<1x256xi32>
      %50 = arith.andi %47, %49 : vector<1x256xi1>
      %cst_26 = arith.constant 0.000000e+00 : f32
      %51 = vector.broadcast %cst_26 : f32 to vector<1x256xf32>
      %52 = arith.select %50, %45, %51 : vector<1x256xi1>, vector<1x256xf32>
      %cst_27 = arith.constant 0.000000e+00 : f32
      %53 = vector.broadcast %cst_27 : f32 to vector<1x2xf32>
      %54 = vector.extract_strided_slice %22 {offsets = [0, 0], sizes = [1, 254], strides = [1, 1]} : vector<1x256xf32> to vector<1x254xf32>
      %55 = tpu.concatenate %53, %54 in 1 : vector<1x2xf32>, vector<1x254xf32> -> vector<1x256xf32>
      %c2_i32 = arith.constant 2 : i32
      %56 = vector.broadcast %c2_i32 : i32 to vector<1x256xi32>
      %57 = arith.cmpi sge, %42, %56 : vector<1x256xi32>
      %c18_i32 = arith.constant 18 : i32
      %58 = vector.broadcast %c18_i32 : i32 to vector<1x256xi32>
      %59 = arith.cmpi slt, %42, %58 : vector<1x256xi32>
      %60 = arith.andi %57, %59 : vector<1x256xi1>
      %cst_28 = arith.constant 0.000000e+00 : f32
      %61 = vector.broadcast %cst_28 : f32 to vector<1x256xf32>
      %62 = arith.select %60, %55, %61 : vector<1x256xi1>, vector<1x256xf32>
      %cst_29 = arith.constant 0.000000e+00 : f32
      %63 = vector.broadcast %cst_29 : f32 to vector<1x1xf32>
      %64 = vector.extract_strided_slice %22 {offsets = [0, 0], sizes = [1, 255], strides = [1, 1]} : vector<1x256xf32> to vector<1x255xf32>
      %65 = tpu.concatenate %63, %64 in 1 : vector<1x1xf32>, vector<1x255xf32> -> vector<1x256xf32>
      %c1_i32_30 = arith.constant 1 : i32
      %66 = vector.broadcast %c1_i32_30 : i32 to vector<1x256xi32>
      %67 = arith.cmpi sge, %42, %66 : vector<1x256xi32>
      %c17_i32 = arith.constant 17 : i32
      %68 = vector.broadcast %c17_i32 : i32 to vector<1x256xi32>
      %69 = arith.cmpi slt, %42, %68 : vector<1x256xi32>
      %70 = arith.andi %67, %69 : vector<1x256xi1>
      %cst_31 = arith.constant 0.000000e+00 : f32
      %71 = vector.broadcast %cst_31 : f32 to vector<1x256xf32>
      %72 = arith.select %70, %65, %71 : vector<1x256xi1>, vector<1x256xf32>
      %cst_32 = arith.constant 0.000000e+00 : f32
      %73 = vector.broadcast %cst_32 : f32 to vector<1x1xf32>
      %74 = vector.extract_strided_slice %22 {offsets = [0, 1], sizes = [1, 255], strides = [1, 1]} : vector<1x256xf32> to vector<1x255xf32>
      %75 = tpu.concatenate %74, %73 in 1 : vector<1x255xf32>, vector<1x1xf32> -> vector<1x256xf32>
      %c-1_i32 = arith.constant -1 : i32
      %76 = vector.broadcast %c-1_i32 : i32 to vector<1x256xi32>
      %77 = arith.cmpi sge, %42, %76 : vector<1x256xi32>
      %c15_i32 = arith.constant 15 : i32
      %78 = vector.broadcast %c15_i32 : i32 to vector<1x256xi32>
      %79 = arith.cmpi slt, %42, %78 : vector<1x256xi32>
      %80 = arith.andi %77, %79 : vector<1x256xi1>
      %cst_33 = arith.constant 0.000000e+00 : f32
      %81 = vector.broadcast %cst_33 : f32 to vector<1x256xf32>
      %82 = arith.select %80, %75, %81 : vector<1x256xi1>, vector<1x256xf32>
      %cst_34 = arith.constant 0.000000e+00 : f32
      %83 = vector.broadcast %cst_34 : f32 to vector<1x2xf32>
      %84 = vector.extract_strided_slice %22 {offsets = [0, 2], sizes = [1, 254], strides = [1, 1]} : vector<1x256xf32> to vector<1x254xf32>
      %85 = tpu.concatenate %84, %83 in 1 : vector<1x254xf32>, vector<1x2xf32> -> vector<1x256xf32>
      %c-2_i32 = arith.constant -2 : i32
      %86 = vector.broadcast %c-2_i32 : i32 to vector<1x256xi32>
      %87 = arith.cmpi sge, %42, %86 : vector<1x256xi32>
      %c14_i32 = arith.constant 14 : i32
      %88 = vector.broadcast %c14_i32 : i32 to vector<1x256xi32>
      %89 = arith.cmpi slt, %42, %88 : vector<1x256xi32>
      %90 = arith.andi %87, %89 : vector<1x256xi1>
      %cst_35 = arith.constant 0.000000e+00 : f32
      %91 = vector.broadcast %cst_35 : f32 to vector<1x256xf32>
      %92 = arith.select %90, %85, %91 : vector<1x256xi1>, vector<1x256xf32>
      %cst_36 = arith.constant 0.000000e+00 : f32
      %93 = vector.broadcast %cst_36 : f32 to vector<1x3xf32>
      %94 = vector.extract_strided_slice %22 {offsets = [0, 3], sizes = [1, 253], strides = [1, 1]} : vector<1x256xf32> to vector<1x253xf32>
      %95 = tpu.concatenate %94, %93 in 1 : vector<1x253xf32>, vector<1x3xf32> -> vector<1x256xf32>
      %c-3_i32 = arith.constant -3 : i32
      %96 = vector.broadcast %c-3_i32 : i32 to vector<1x256xi32>
      %97 = arith.cmpi sge, %42, %96 : vector<1x256xi32>
      %c13_i32 = arith.constant 13 : i32
      %98 = vector.broadcast %c13_i32 : i32 to vector<1x256xi32>
      %99 = arith.cmpi slt, %42, %98 : vector<1x256xi32>
      %100 = arith.andi %97, %99 : vector<1x256xi1>
      %cst_37 = arith.constant 0.000000e+00 : f32
      %101 = vector.broadcast %cst_37 : f32 to vector<1x256xf32>
      %102 = arith.select %100, %95, %101 : vector<1x256xi1>, vector<1x256xf32>
      %cst_38 = arith.constant 0.000000e+00 : f32
      %103 = vector.broadcast %cst_38 : f32 to vector<1x3xf32>
      %104 = vector.extract_strided_slice %25 {offsets = [0, 0], sizes = [1, 253], strides = [1, 1]} : vector<1x256xf32> to vector<1x253xf32>
      %105 = tpu.concatenate %103, %104 in 1 : vector<1x3xf32>, vector<1x253xf32> -> vector<1x256xf32>
      %c3_i32_39 = arith.constant 3 : i32
      %106 = vector.broadcast %c3_i32_39 : i32 to vector<1x256xi32>
      %107 = arith.cmpi sge, %42, %106 : vector<1x256xi32>
      %c19_i32_40 = arith.constant 19 : i32
      %108 = vector.broadcast %c19_i32_40 : i32 to vector<1x256xi32>
      %109 = arith.cmpi slt, %42, %108 : vector<1x256xi32>
      %110 = arith.andi %107, %109 : vector<1x256xi1>
      %cst_41 = arith.constant 0.000000e+00 : f32
      %111 = vector.broadcast %cst_41 : f32 to vector<1x256xf32>
      %112 = arith.select %110, %105, %111 : vector<1x256xi1>, vector<1x256xf32>
      %cst_42 = arith.constant 0.000000e+00 : f32
      %113 = vector.broadcast %cst_42 : f32 to vector<1x2xf32>
      %114 = vector.extract_strided_slice %25 {offsets = [0, 0], sizes = [1, 254], strides = [1, 1]} : vector<1x256xf32> to vector<1x254xf32>
      %115 = tpu.concatenate %113, %114 in 1 : vector<1x2xf32>, vector<1x254xf32> -> vector<1x256xf32>
      %c2_i32_43 = arith.constant 2 : i32
      %116 = vector.broadcast %c2_i32_43 : i32 to vector<1x256xi32>
      %117 = arith.cmpi sge, %42, %116 : vector<1x256xi32>
      %c18_i32_44 = arith.constant 18 : i32
      %118 = vector.broadcast %c18_i32_44 : i32 to vector<1x256xi32>
      %119 = arith.cmpi slt, %42, %118 : vector<1x256xi32>
      %120 = arith.andi %117, %119 : vector<1x256xi1>
      %cst_45 = arith.constant 0.000000e+00 : f32
      %121 = vector.broadcast %cst_45 : f32 to vector<1x256xf32>
      %122 = arith.select %120, %115, %121 : vector<1x256xi1>, vector<1x256xf32>
      %cst_46 = arith.constant 0.000000e+00 : f32
      %123 = vector.broadcast %cst_46 : f32 to vector<1x1xf32>
      %124 = vector.extract_strided_slice %25 {offsets = [0, 0], sizes = [1, 255], strides = [1, 1]} : vector<1x256xf32> to vector<1x255xf32>
      %125 = tpu.concatenate %123, %124 in 1 : vector<1x1xf32>, vector<1x255xf32> -> vector<1x256xf32>
      %c1_i32_47 = arith.constant 1 : i32
      %126 = vector.broadcast %c1_i32_47 : i32 to vector<1x256xi32>
      %127 = arith.cmpi sge, %42, %126 : vector<1x256xi32>
      %c17_i32_48 = arith.constant 17 : i32
      %128 = vector.broadcast %c17_i32_48 : i32 to vector<1x256xi32>
      %129 = arith.cmpi slt, %42, %128 : vector<1x256xi32>
      %130 = arith.andi %127, %129 : vector<1x256xi1>
      %cst_49 = arith.constant 0.000000e+00 : f32
      %131 = vector.broadcast %cst_49 : f32 to vector<1x256xf32>
      %132 = arith.select %130, %125, %131 : vector<1x256xi1>, vector<1x256xf32>
      %cst_50 = arith.constant 0.000000e+00 : f32
      %133 = vector.broadcast %cst_50 : f32 to vector<1x1xf32>
      %134 = vector.extract_strided_slice %25 {offsets = [0, 1], sizes = [1, 255], strides = [1, 1]} : vector<1x256xf32> to vector<1x255xf32>
      %135 = tpu.concatenate %134, %133 in 1 : vector<1x255xf32>, vector<1x1xf32> -> vector<1x256xf32>
      %c-1_i32_51 = arith.constant -1 : i32
      %136 = vector.broadcast %c-1_i32_51 : i32 to vector<1x256xi32>
      %137 = arith.cmpi sge, %42, %136 : vector<1x256xi32>
      %c15_i32_52 = arith.constant 15 : i32
      %138 = vector.broadcast %c15_i32_52 : i32 to vector<1x256xi32>
      %139 = arith.cmpi slt, %42, %138 : vector<1x256xi32>
      %140 = arith.andi %137, %139 : vector<1x256xi1>
      %cst_53 = arith.constant 0.000000e+00 : f32
      %141 = vector.broadcast %cst_53 : f32 to vector<1x256xf32>
      %142 = arith.select %140, %135, %141 : vector<1x256xi1>, vector<1x256xf32>
      %cst_54 = arith.constant 0.000000e+00 : f32
      %143 = vector.broadcast %cst_54 : f32 to vector<1x2xf32>
      %144 = vector.extract_strided_slice %25 {offsets = [0, 2], sizes = [1, 254], strides = [1, 1]} : vector<1x256xf32> to vector<1x254xf32>
      %145 = tpu.concatenate %144, %143 in 1 : vector<1x254xf32>, vector<1x2xf32> -> vector<1x256xf32>
      %c-2_i32_55 = arith.constant -2 : i32
      %146 = vector.broadcast %c-2_i32_55 : i32 to vector<1x256xi32>
      %147 = arith.cmpi sge, %42, %146 : vector<1x256xi32>
      %c14_i32_56 = arith.constant 14 : i32
      %148 = vector.broadcast %c14_i32_56 : i32 to vector<1x256xi32>
      %149 = arith.cmpi slt, %42, %148 : vector<1x256xi32>
      %150 = arith.andi %147, %149 : vector<1x256xi1>
      %cst_57 = arith.constant 0.000000e+00 : f32
      %151 = vector.broadcast %cst_57 : f32 to vector<1x256xf32>
      %152 = arith.select %150, %145, %151 : vector<1x256xi1>, vector<1x256xf32>
      %cst_58 = arith.constant 0.000000e+00 : f32
      %153 = vector.broadcast %cst_58 : f32 to vector<1x3xf32>
      %154 = vector.extract_strided_slice %25 {offsets = [0, 3], sizes = [1, 253], strides = [1, 1]} : vector<1x256xf32> to vector<1x253xf32>
      %155 = tpu.concatenate %154, %153 in 1 : vector<1x253xf32>, vector<1x3xf32> -> vector<1x256xf32>
      %c-3_i32_59 = arith.constant -3 : i32
      %156 = vector.broadcast %c-3_i32_59 : i32 to vector<1x256xi32>
      %157 = arith.cmpi sge, %42, %156 : vector<1x256xi32>
      %c13_i32_60 = arith.constant 13 : i32
      %158 = vector.broadcast %c13_i32_60 : i32 to vector<1x256xi32>
      %159 = arith.cmpi slt, %42, %158 : vector<1x256xi32>
      %160 = arith.andi %157, %159 : vector<1x256xi1>
      %cst_61 = arith.constant 0.000000e+00 : f32
      %161 = vector.broadcast %cst_61 : f32 to vector<1x256xf32>
      %162 = arith.select %160, %155, %161 : vector<1x256xi1>, vector<1x256xf32>
      %cst_62 = arith.constant 0.000000e+00 : f32
      %163 = vector.broadcast %cst_62 : f32 to vector<1x256xf32>
      %cst_63 = arith.constant 0.000000e+00 : f32
      %164 = vector.broadcast %cst_63 : f32 to vector<1x256xf32>
      %c0_64 = arith.constant 0 : index
      %165 = memref.load %arg2[%c0_64] : memref<98xf32, #tpu.memory_space<smem>>
      %166 = vector.broadcast %165 : f32 to vector<1x256xf32>
      %167 = arith.mulf %166, %52 : vector<1x256xf32>
      %168 = arith.addf %164, %167 : vector<1x256xf32>
      %c1 = arith.constant 1 : index
      %169 = memref.load %arg2[%c1] : memref<98xf32, #tpu.memory_space<smem>>
      %170 = vector.broadcast %169 : f32 to vector<1x256xf32>
      %171 = arith.mulf %170, %62 : vector<1x256xf32>
      %172 = arith.addf %168, %171 : vector<1x256xf32>
      %c2 = arith.constant 2 : index
      %173 = memref.load %arg2[%c2] : memref<98xf32, #tpu.memory_space<smem>>
      %174 = vector.broadcast %173 : f32 to vector<1x256xf32>
      %175 = arith.mulf %174, %72 : vector<1x256xf32>
      %176 = arith.addf %172, %175 : vector<1x256xf32>
      %c3 = arith.constant 3 : index
      %177 = memref.load %arg2[%c3] : memref<98xf32, #tpu.memory_space<smem>>
      %178 = vector.broadcast %177 : f32 to vector<1x256xf32>
      %179 = arith.mulf %178, %22 : vector<1x256xf32>
      %180 = arith.addf %176, %179 : vector<1x256xf32>
      %c4 = arith.constant 4 : index
      %181 = memref.load %arg2[%c4] : memref<98xf32, #tpu.memory_space<smem>>
      %182 = vector.broadcast %181 : f32 to vector<1x256xf32>
      %183 = arith.mulf %182, %82 : vector<1x256xf32>
      %184 = arith.addf %180, %183 : vector<1x256xf32>
      %c5 = arith.constant 5 : index
      %185 = memref.load %arg2[%c5] : memref<98xf32, #tpu.memory_space<smem>>
      %186 = vector.broadcast %185 : f32 to vector<1x256xf32>
      %187 = arith.mulf %186, %92 : vector<1x256xf32>
      %188 = arith.addf %184, %187 : vector<1x256xf32>
      %c6 = arith.constant 6 : index
      %189 = memref.load %arg2[%c6] : memref<98xf32, #tpu.memory_space<smem>>
      %190 = vector.broadcast %189 : f32 to vector<1x256xf32>
      %191 = arith.mulf %190, %102 : vector<1x256xf32>
      %192 = arith.addf %188, %191 : vector<1x256xf32>
      %cst_65 = arith.constant 0.000000e+00 : f32
      %193 = vector.broadcast %cst_65 : f32 to vector<1x48xf32>
      %194 = vector.extract_strided_slice %192 {offsets = [0, 0], sizes = [1, 208], strides = [1, 1]} : vector<1x256xf32> to vector<1x208xf32>
      %195 = tpu.concatenate %193, %194 in 1 : vector<1x48xf32>, vector<1x208xf32> -> vector<1x256xf32>
      %196 = arith.addf %163, %195 : vector<1x256xf32>
      %cst_66 = arith.constant 0.000000e+00 : f32
      %197 = vector.broadcast %cst_66 : f32 to vector<1x256xf32>
      %c7 = arith.constant 7 : index
      %198 = memref.load %arg2[%c7] : memref<98xf32, #tpu.memory_space<smem>>
      %199 = vector.broadcast %198 : f32 to vector<1x256xf32>
      %200 = arith.mulf %199, %52 : vector<1x256xf32>
      %201 = arith.addf %197, %200 : vector<1x256xf32>
      %c8 = arith.constant 8 : index
      %202 = memref.load %arg2[%c8] : memref<98xf32, #tpu.memory_space<smem>>
      %203 = vector.broadcast %202 : f32 to vector<1x256xf32>
      %204 = arith.mulf %203, %62 : vector<1x256xf32>
      %205 = arith.addf %201, %204 : vector<1x256xf32>
      %c9 = arith.constant 9 : index
      %206 = memref.load %arg2[%c9] : memref<98xf32, #tpu.memory_space<smem>>
      %207 = vector.broadcast %206 : f32 to vector<1x256xf32>
      %208 = arith.mulf %207, %72 : vector<1x256xf32>
      %209 = arith.addf %205, %208 : vector<1x256xf32>
      %c10 = arith.constant 10 : index
      %210 = memref.load %arg2[%c10] : memref<98xf32, #tpu.memory_space<smem>>
      %211 = vector.broadcast %210 : f32 to vector<1x256xf32>
      %212 = arith.mulf %211, %22 : vector<1x256xf32>
      %213 = arith.addf %209, %212 : vector<1x256xf32>
      %c11 = arith.constant 11 : index
      %214 = memref.load %arg2[%c11] : memref<98xf32, #tpu.memory_space<smem>>
      %215 = vector.broadcast %214 : f32 to vector<1x256xf32>
      %216 = arith.mulf %215, %82 : vector<1x256xf32>
      %217 = arith.addf %213, %216 : vector<1x256xf32>
      %c12 = arith.constant 12 : index
      %218 = memref.load %arg2[%c12] : memref<98xf32, #tpu.memory_space<smem>>
      %219 = vector.broadcast %218 : f32 to vector<1x256xf32>
      %220 = arith.mulf %219, %92 : vector<1x256xf32>
      %221 = arith.addf %217, %220 : vector<1x256xf32>
      %c13 = arith.constant 13 : index
      %222 = memref.load %arg2[%c13] : memref<98xf32, #tpu.memory_space<smem>>
      %223 = vector.broadcast %222 : f32 to vector<1x256xf32>
      %224 = arith.mulf %223, %102 : vector<1x256xf32>
      %225 = arith.addf %221, %224 : vector<1x256xf32>
      %cst_67 = arith.constant 0.000000e+00 : f32
      %226 = vector.broadcast %cst_67 : f32 to vector<1x32xf32>
      %227 = vector.extract_strided_slice %225 {offsets = [0, 0], sizes = [1, 224], strides = [1, 1]} : vector<1x256xf32> to vector<1x224xf32>
      %228 = tpu.concatenate %226, %227 in 1 : vector<1x32xf32>, vector<1x224xf32> -> vector<1x256xf32>
      %229 = arith.addf %196, %228 : vector<1x256xf32>
      %cst_68 = arith.constant 0.000000e+00 : f32
      %230 = vector.broadcast %cst_68 : f32 to vector<1x256xf32>
      %c14 = arith.constant 14 : index
      %231 = memref.load %arg2[%c14] : memref<98xf32, #tpu.memory_space<smem>>
      %232 = vector.broadcast %231 : f32 to vector<1x256xf32>
      %233 = arith.mulf %232, %52 : vector<1x256xf32>
      %234 = arith.addf %230, %233 : vector<1x256xf32>
      %c15 = arith.constant 15 : index
      %235 = memref.load %arg2[%c15] : memref<98xf32, #tpu.memory_space<smem>>
      %236 = vector.broadcast %235 : f32 to vector<1x256xf32>
      %237 = arith.mulf %236, %62 : vector<1x256xf32>
      %238 = arith.addf %234, %237 : vector<1x256xf32>
      %c16 = arith.constant 16 : index
      %239 = memref.load %arg2[%c16] : memref<98xf32, #tpu.memory_space<smem>>
      %240 = vector.broadcast %239 : f32 to vector<1x256xf32>
      %241 = arith.mulf %240, %72 : vector<1x256xf32>
      %242 = arith.addf %238, %241 : vector<1x256xf32>
      %c17 = arith.constant 17 : index
      %243 = memref.load %arg2[%c17] : memref<98xf32, #tpu.memory_space<smem>>
      %244 = vector.broadcast %243 : f32 to vector<1x256xf32>
      %245 = arith.mulf %244, %22 : vector<1x256xf32>
      %246 = arith.addf %242, %245 : vector<1x256xf32>
      %c18 = arith.constant 18 : index
      %247 = memref.load %arg2[%c18] : memref<98xf32, #tpu.memory_space<smem>>
      %248 = vector.broadcast %247 : f32 to vector<1x256xf32>
      %249 = arith.mulf %248, %82 : vector<1x256xf32>
      %250 = arith.addf %246, %249 : vector<1x256xf32>
      %c19 = arith.constant 19 : index
      %251 = memref.load %arg2[%c19] : memref<98xf32, #tpu.memory_space<smem>>
      %252 = vector.broadcast %251 : f32 to vector<1x256xf32>
      %253 = arith.mulf %252, %92 : vector<1x256xf32>
      %254 = arith.addf %250, %253 : vector<1x256xf32>
      %c20 = arith.constant 20 : index
      %255 = memref.load %arg2[%c20] : memref<98xf32, #tpu.memory_space<smem>>
      %256 = vector.broadcast %255 : f32 to vector<1x256xf32>
      %257 = arith.mulf %256, %102 : vector<1x256xf32>
      %258 = arith.addf %254, %257 : vector<1x256xf32>
      %cst_69 = arith.constant 0.000000e+00 : f32
      %259 = vector.broadcast %cst_69 : f32 to vector<1x16xf32>
      %260 = vector.extract_strided_slice %258 {offsets = [0, 0], sizes = [1, 240], strides = [1, 1]} : vector<1x256xf32> to vector<1x240xf32>
      %261 = tpu.concatenate %259, %260 in 1 : vector<1x16xf32>, vector<1x240xf32> -> vector<1x256xf32>
      %262 = arith.addf %229, %261 : vector<1x256xf32>
      %cst_70 = arith.constant 0.000000e+00 : f32
      %263 = vector.broadcast %cst_70 : f32 to vector<1x256xf32>
      %c21 = arith.constant 21 : index
      %264 = memref.load %arg2[%c21] : memref<98xf32, #tpu.memory_space<smem>>
      %265 = vector.broadcast %264 : f32 to vector<1x256xf32>
      %266 = arith.mulf %265, %52 : vector<1x256xf32>
      %267 = arith.addf %263, %266 : vector<1x256xf32>
      %c22 = arith.constant 22 : index
      %268 = memref.load %arg2[%c22] : memref<98xf32, #tpu.memory_space<smem>>
      %269 = vector.broadcast %268 : f32 to vector<1x256xf32>
      %270 = arith.mulf %269, %62 : vector<1x256xf32>
      %271 = arith.addf %267, %270 : vector<1x256xf32>
      %c23 = arith.constant 23 : index
      %272 = memref.load %arg2[%c23] : memref<98xf32, #tpu.memory_space<smem>>
      %273 = vector.broadcast %272 : f32 to vector<1x256xf32>
      %274 = arith.mulf %273, %72 : vector<1x256xf32>
      %275 = arith.addf %271, %274 : vector<1x256xf32>
      %c24 = arith.constant 24 : index
      %276 = memref.load %arg2[%c24] : memref<98xf32, #tpu.memory_space<smem>>
      %277 = vector.broadcast %276 : f32 to vector<1x256xf32>
      %278 = arith.mulf %277, %22 : vector<1x256xf32>
      %279 = arith.addf %275, %278 : vector<1x256xf32>
      %c25 = arith.constant 25 : index
      %280 = memref.load %arg2[%c25] : memref<98xf32, #tpu.memory_space<smem>>
      %281 = vector.broadcast %280 : f32 to vector<1x256xf32>
      %282 = arith.mulf %281, %82 : vector<1x256xf32>
      %283 = arith.addf %279, %282 : vector<1x256xf32>
      %c26 = arith.constant 26 : index
      %284 = memref.load %arg2[%c26] : memref<98xf32, #tpu.memory_space<smem>>
      %285 = vector.broadcast %284 : f32 to vector<1x256xf32>
      %286 = arith.mulf %285, %92 : vector<1x256xf32>
      %287 = arith.addf %283, %286 : vector<1x256xf32>
      %c27 = arith.constant 27 : index
      %288 = memref.load %arg2[%c27] : memref<98xf32, #tpu.memory_space<smem>>
      %289 = vector.broadcast %288 : f32 to vector<1x256xf32>
      %290 = arith.mulf %289, %102 : vector<1x256xf32>
      %291 = arith.addf %287, %290 : vector<1x256xf32>
      %292 = arith.addf %262, %291 : vector<1x256xf32>
      %cst_71 = arith.constant 0.000000e+00 : f32
      %293 = vector.broadcast %cst_71 : f32 to vector<1x256xf32>
      %c28 = arith.constant 28 : index
      %294 = memref.load %arg2[%c28] : memref<98xf32, #tpu.memory_space<smem>>
      %295 = vector.broadcast %294 : f32 to vector<1x256xf32>
      %296 = arith.mulf %295, %52 : vector<1x256xf32>
      %297 = arith.addf %293, %296 : vector<1x256xf32>
      %c29 = arith.constant 29 : index
      %298 = memref.load %arg2[%c29] : memref<98xf32, #tpu.memory_space<smem>>
      %299 = vector.broadcast %298 : f32 to vector<1x256xf32>
      %300 = arith.mulf %299, %62 : vector<1x256xf32>
      %301 = arith.addf %297, %300 : vector<1x256xf32>
      %c30 = arith.constant 30 : index
      %302 = memref.load %arg2[%c30] : memref<98xf32, #tpu.memory_space<smem>>
      %303 = vector.broadcast %302 : f32 to vector<1x256xf32>
      %304 = arith.mulf %303, %72 : vector<1x256xf32>
      %305 = arith.addf %301, %304 : vector<1x256xf32>
      %c31 = arith.constant 31 : index
      %306 = memref.load %arg2[%c31] : memref<98xf32, #tpu.memory_space<smem>>
      %307 = vector.broadcast %306 : f32 to vector<1x256xf32>
      %308 = arith.mulf %307, %22 : vector<1x256xf32>
      %309 = arith.addf %305, %308 : vector<1x256xf32>
      %c32 = arith.constant 32 : index
      %310 = memref.load %arg2[%c32] : memref<98xf32, #tpu.memory_space<smem>>
      %311 = vector.broadcast %310 : f32 to vector<1x256xf32>
      %312 = arith.mulf %311, %82 : vector<1x256xf32>
      %313 = arith.addf %309, %312 : vector<1x256xf32>
      %c33 = arith.constant 33 : index
      %314 = memref.load %arg2[%c33] : memref<98xf32, #tpu.memory_space<smem>>
      %315 = vector.broadcast %314 : f32 to vector<1x256xf32>
      %316 = arith.mulf %315, %92 : vector<1x256xf32>
      %317 = arith.addf %313, %316 : vector<1x256xf32>
      %c34 = arith.constant 34 : index
      %318 = memref.load %arg2[%c34] : memref<98xf32, #tpu.memory_space<smem>>
      %319 = vector.broadcast %318 : f32 to vector<1x256xf32>
      %320 = arith.mulf %319, %102 : vector<1x256xf32>
      %321 = arith.addf %317, %320 : vector<1x256xf32>
      %cst_72 = arith.constant 0.000000e+00 : f32
      %322 = vector.broadcast %cst_72 : f32 to vector<1x16xf32>
      %323 = vector.extract_strided_slice %321 {offsets = [0, 16], sizes = [1, 240], strides = [1, 1]} : vector<1x256xf32> to vector<1x240xf32>
      %324 = tpu.concatenate %323, %322 in 1 : vector<1x240xf32>, vector<1x16xf32> -> vector<1x256xf32>
      %325 = arith.addf %292, %324 : vector<1x256xf32>
      %cst_73 = arith.constant 0.000000e+00 : f32
      %326 = vector.broadcast %cst_73 : f32 to vector<1x256xf32>
      %c35 = arith.constant 35 : index
      %327 = memref.load %arg2[%c35] : memref<98xf32, #tpu.memory_space<smem>>
      %328 = vector.broadcast %327 : f32 to vector<1x256xf32>
      %329 = arith.mulf %328, %52 : vector<1x256xf32>
      %330 = arith.addf %326, %329 : vector<1x256xf32>
      %c36 = arith.constant 36 : index
      %331 = memref.load %arg2[%c36] : memref<98xf32, #tpu.memory_space<smem>>
      %332 = vector.broadcast %331 : f32 to vector<1x256xf32>
      %333 = arith.mulf %332, %62 : vector<1x256xf32>
      %334 = arith.addf %330, %333 : vector<1x256xf32>
      %c37 = arith.constant 37 : index
      %335 = memref.load %arg2[%c37] : memref<98xf32, #tpu.memory_space<smem>>
      %336 = vector.broadcast %335 : f32 to vector<1x256xf32>
      %337 = arith.mulf %336, %72 : vector<1x256xf32>
      %338 = arith.addf %334, %337 : vector<1x256xf32>
      %c38 = arith.constant 38 : index
      %339 = memref.load %arg2[%c38] : memref<98xf32, #tpu.memory_space<smem>>
      %340 = vector.broadcast %339 : f32 to vector<1x256xf32>
      %341 = arith.mulf %340, %22 : vector<1x256xf32>
      %342 = arith.addf %338, %341 : vector<1x256xf32>
      %c39 = arith.constant 39 : index
      %343 = memref.load %arg2[%c39] : memref<98xf32, #tpu.memory_space<smem>>
      %344 = vector.broadcast %343 : f32 to vector<1x256xf32>
      %345 = arith.mulf %344, %82 : vector<1x256xf32>
      %346 = arith.addf %342, %345 : vector<1x256xf32>
      %c40 = arith.constant 40 : index
      %347 = memref.load %arg2[%c40] : memref<98xf32, #tpu.memory_space<smem>>
      %348 = vector.broadcast %347 : f32 to vector<1x256xf32>
      %349 = arith.mulf %348, %92 : vector<1x256xf32>
      %350 = arith.addf %346, %349 : vector<1x256xf32>
      %c41 = arith.constant 41 : index
      %351 = memref.load %arg2[%c41] : memref<98xf32, #tpu.memory_space<smem>>
      %352 = vector.broadcast %351 : f32 to vector<1x256xf32>
      %353 = arith.mulf %352, %102 : vector<1x256xf32>
      %354 = arith.addf %350, %353 : vector<1x256xf32>
      %cst_74 = arith.constant 0.000000e+00 : f32
      %355 = vector.broadcast %cst_74 : f32 to vector<1x32xf32>
      %356 = vector.extract_strided_slice %354 {offsets = [0, 32], sizes = [1, 224], strides = [1, 1]} : vector<1x256xf32> to vector<1x224xf32>
      %357 = tpu.concatenate %356, %355 in 1 : vector<1x224xf32>, vector<1x32xf32> -> vector<1x256xf32>
      %358 = arith.addf %325, %357 : vector<1x256xf32>
      %cst_75 = arith.constant 0.000000e+00 : f32
      %359 = vector.broadcast %cst_75 : f32 to vector<1x256xf32>
      %c42 = arith.constant 42 : index
      %360 = memref.load %arg2[%c42] : memref<98xf32, #tpu.memory_space<smem>>
      %361 = vector.broadcast %360 : f32 to vector<1x256xf32>
      %362 = arith.mulf %361, %52 : vector<1x256xf32>
      %363 = arith.addf %359, %362 : vector<1x256xf32>
      %c43 = arith.constant 43 : index
      %364 = memref.load %arg2[%c43] : memref<98xf32, #tpu.memory_space<smem>>
      %365 = vector.broadcast %364 : f32 to vector<1x256xf32>
      %366 = arith.mulf %365, %62 : vector<1x256xf32>
      %367 = arith.addf %363, %366 : vector<1x256xf32>
      %c44 = arith.constant 44 : index
      %368 = memref.load %arg2[%c44] : memref<98xf32, #tpu.memory_space<smem>>
      %369 = vector.broadcast %368 : f32 to vector<1x256xf32>
      %370 = arith.mulf %369, %72 : vector<1x256xf32>
      %371 = arith.addf %367, %370 : vector<1x256xf32>
      %c45 = arith.constant 45 : index
      %372 = memref.load %arg2[%c45] : memref<98xf32, #tpu.memory_space<smem>>
      %373 = vector.broadcast %372 : f32 to vector<1x256xf32>
      %374 = arith.mulf %373, %22 : vector<1x256xf32>
      %375 = arith.addf %371, %374 : vector<1x256xf32>
      %c46 = arith.constant 46 : index
      %376 = memref.load %arg2[%c46] : memref<98xf32, #tpu.memory_space<smem>>
      %377 = vector.broadcast %376 : f32 to vector<1x256xf32>
      %378 = arith.mulf %377, %82 : vector<1x256xf32>
      %379 = arith.addf %375, %378 : vector<1x256xf32>
      %c47 = arith.constant 47 : index
      %380 = memref.load %arg2[%c47] : memref<98xf32, #tpu.memory_space<smem>>
      %381 = vector.broadcast %380 : f32 to vector<1x256xf32>
      %382 = arith.mulf %381, %92 : vector<1x256xf32>
      %383 = arith.addf %379, %382 : vector<1x256xf32>
      %c48 = arith.constant 48 : index
      %384 = memref.load %arg2[%c48] : memref<98xf32, #tpu.memory_space<smem>>
      %385 = vector.broadcast %384 : f32 to vector<1x256xf32>
      %386 = arith.mulf %385, %102 : vector<1x256xf32>
      %387 = arith.addf %383, %386 : vector<1x256xf32>
      %cst_76 = arith.constant 0.000000e+00 : f32
      %388 = vector.broadcast %cst_76 : f32 to vector<1x48xf32>
      %389 = vector.extract_strided_slice %387 {offsets = [0, 48], sizes = [1, 208], strides = [1, 1]} : vector<1x256xf32> to vector<1x208xf32>
      %390 = tpu.concatenate %389, %388 in 1 : vector<1x208xf32>, vector<1x48xf32> -> vector<1x256xf32>
      %391 = arith.addf %358, %390 : vector<1x256xf32>
      %cst_77 = arith.constant 0.000000e+00 : f32
      %392 = vector.broadcast %cst_77 : f32 to vector<1x256xf32>
      %c49 = arith.constant 49 : index
      %393 = memref.load %arg2[%c49] : memref<98xf32, #tpu.memory_space<smem>>
      %394 = vector.broadcast %393 : f32 to vector<1x256xf32>
      %395 = arith.mulf %394, %112 : vector<1x256xf32>
      %396 = arith.addf %392, %395 : vector<1x256xf32>
      %c50 = arith.constant 50 : index
      %397 = memref.load %arg2[%c50] : memref<98xf32, #tpu.memory_space<smem>>
      %398 = vector.broadcast %397 : f32 to vector<1x256xf32>
      %399 = arith.mulf %398, %122 : vector<1x256xf32>
      %400 = arith.addf %396, %399 : vector<1x256xf32>
      %c51 = arith.constant 51 : index
      %401 = memref.load %arg2[%c51] : memref<98xf32, #tpu.memory_space<smem>>
      %402 = vector.broadcast %401 : f32 to vector<1x256xf32>
      %403 = arith.mulf %402, %132 : vector<1x256xf32>
      %404 = arith.addf %400, %403 : vector<1x256xf32>
      %c52 = arith.constant 52 : index
      %405 = memref.load %arg2[%c52] : memref<98xf32, #tpu.memory_space<smem>>
      %406 = vector.broadcast %405 : f32 to vector<1x256xf32>
      %407 = arith.mulf %406, %25 : vector<1x256xf32>
      %408 = arith.addf %404, %407 : vector<1x256xf32>
      %c53 = arith.constant 53 : index
      %409 = memref.load %arg2[%c53] : memref<98xf32, #tpu.memory_space<smem>>
      %410 = vector.broadcast %409 : f32 to vector<1x256xf32>
      %411 = arith.mulf %410, %142 : vector<1x256xf32>
      %412 = arith.addf %408, %411 : vector<1x256xf32>
      %c54 = arith.constant 54 : index
      %413 = memref.load %arg2[%c54] : memref<98xf32, #tpu.memory_space<smem>>
      %414 = vector.broadcast %413 : f32 to vector<1x256xf32>
      %415 = arith.mulf %414, %152 : vector<1x256xf32>
      %416 = arith.addf %412, %415 : vector<1x256xf32>
      %c55 = arith.constant 55 : index
      %417 = memref.load %arg2[%c55] : memref<98xf32, #tpu.memory_space<smem>>
      %418 = vector.broadcast %417 : f32 to vector<1x256xf32>
      %419 = arith.mulf %418, %162 : vector<1x256xf32>
      %420 = arith.addf %416, %419 : vector<1x256xf32>
      %cst_78 = arith.constant 0.000000e+00 : f32
      %421 = vector.broadcast %cst_78 : f32 to vector<1x48xf32>
      %422 = vector.extract_strided_slice %420 {offsets = [0, 0], sizes = [1, 208], strides = [1, 1]} : vector<1x256xf32> to vector<1x208xf32>
      %423 = tpu.concatenate %421, %422 in 1 : vector<1x48xf32>, vector<1x208xf32> -> vector<1x256xf32>
      %424 = arith.addf %391, %423 : vector<1x256xf32>
      %cst_79 = arith.constant 0.000000e+00 : f32
      %425 = vector.broadcast %cst_79 : f32 to vector<1x256xf32>
      %c56 = arith.constant 56 : index
      %426 = memref.load %arg2[%c56] : memref<98xf32, #tpu.memory_space<smem>>
      %427 = vector.broadcast %426 : f32 to vector<1x256xf32>
      %428 = arith.mulf %427, %112 : vector<1x256xf32>
      %429 = arith.addf %425, %428 : vector<1x256xf32>
      %c57 = arith.constant 57 : index
      %430 = memref.load %arg2[%c57] : memref<98xf32, #tpu.memory_space<smem>>
      %431 = vector.broadcast %430 : f32 to vector<1x256xf32>
      %432 = arith.mulf %431, %122 : vector<1x256xf32>
      %433 = arith.addf %429, %432 : vector<1x256xf32>
      %c58 = arith.constant 58 : index
      %434 = memref.load %arg2[%c58] : memref<98xf32, #tpu.memory_space<smem>>
      %435 = vector.broadcast %434 : f32 to vector<1x256xf32>
      %436 = arith.mulf %435, %132 : vector<1x256xf32>
      %437 = arith.addf %433, %436 : vector<1x256xf32>
      %c59 = arith.constant 59 : index
      %438 = memref.load %arg2[%c59] : memref<98xf32, #tpu.memory_space<smem>>
      %439 = vector.broadcast %438 : f32 to vector<1x256xf32>
      %440 = arith.mulf %439, %25 : vector<1x256xf32>
      %441 = arith.addf %437, %440 : vector<1x256xf32>
      %c60 = arith.constant 60 : index
      %442 = memref.load %arg2[%c60] : memref<98xf32, #tpu.memory_space<smem>>
      %443 = vector.broadcast %442 : f32 to vector<1x256xf32>
      %444 = arith.mulf %443, %142 : vector<1x256xf32>
      %445 = arith.addf %441, %444 : vector<1x256xf32>
      %c61 = arith.constant 61 : index
      %446 = memref.load %arg2[%c61] : memref<98xf32, #tpu.memory_space<smem>>
      %447 = vector.broadcast %446 : f32 to vector<1x256xf32>
      %448 = arith.mulf %447, %152 : vector<1x256xf32>
      %449 = arith.addf %445, %448 : vector<1x256xf32>
      %c62 = arith.constant 62 : index
      %450 = memref.load %arg2[%c62] : memref<98xf32, #tpu.memory_space<smem>>
      %451 = vector.broadcast %450 : f32 to vector<1x256xf32>
      %452 = arith.mulf %451, %162 : vector<1x256xf32>
      %453 = arith.addf %449, %452 : vector<1x256xf32>
      %cst_80 = arith.constant 0.000000e+00 : f32
      %454 = vector.broadcast %cst_80 : f32 to vector<1x32xf32>
      %455 = vector.extract_strided_slice %453 {offsets = [0, 0], sizes = [1, 224], strides = [1, 1]} : vector<1x256xf32> to vector<1x224xf32>
      %456 = tpu.concatenate %454, %455 in 1 : vector<1x32xf32>, vector<1x224xf32> -> vector<1x256xf32>
      %457 = arith.addf %424, %456 : vector<1x256xf32>
      %cst_81 = arith.constant 0.000000e+00 : f32
      %458 = vector.broadcast %cst_81 : f32 to vector<1x256xf32>
      %c63 = arith.constant 63 : index
      %459 = memref.load %arg2[%c63] : memref<98xf32, #tpu.memory_space<smem>>
      %460 = vector.broadcast %459 : f32 to vector<1x256xf32>
      %461 = arith.mulf %460, %112 : vector<1x256xf32>
      %462 = arith.addf %458, %461 : vector<1x256xf32>
      %c64 = arith.constant 64 : index
      %463 = memref.load %arg2[%c64] : memref<98xf32, #tpu.memory_space<smem>>
      %464 = vector.broadcast %463 : f32 to vector<1x256xf32>
      %465 = arith.mulf %464, %122 : vector<1x256xf32>
      %466 = arith.addf %462, %465 : vector<1x256xf32>
      %c65 = arith.constant 65 : index
      %467 = memref.load %arg2[%c65] : memref<98xf32, #tpu.memory_space<smem>>
      %468 = vector.broadcast %467 : f32 to vector<1x256xf32>
      %469 = arith.mulf %468, %132 : vector<1x256xf32>
      %470 = arith.addf %466, %469 : vector<1x256xf32>
      %c66 = arith.constant 66 : index
      %471 = memref.load %arg2[%c66] : memref<98xf32, #tpu.memory_space<smem>>
      %472 = vector.broadcast %471 : f32 to vector<1x256xf32>
      %473 = arith.mulf %472, %25 : vector<1x256xf32>
      %474 = arith.addf %470, %473 : vector<1x256xf32>
      %c67 = arith.constant 67 : index
      %475 = memref.load %arg2[%c67] : memref<98xf32, #tpu.memory_space<smem>>
      %476 = vector.broadcast %475 : f32 to vector<1x256xf32>
      %477 = arith.mulf %476, %142 : vector<1x256xf32>
      %478 = arith.addf %474, %477 : vector<1x256xf32>
      %c68 = arith.constant 68 : index
      %479 = memref.load %arg2[%c68] : memref<98xf32, #tpu.memory_space<smem>>
      %480 = vector.broadcast %479 : f32 to vector<1x256xf32>
      %481 = arith.mulf %480, %152 : vector<1x256xf32>
      %482 = arith.addf %478, %481 : vector<1x256xf32>
      %c69 = arith.constant 69 : index
      %483 = memref.load %arg2[%c69] : memref<98xf32, #tpu.memory_space<smem>>
      %484 = vector.broadcast %483 : f32 to vector<1x256xf32>
      %485 = arith.mulf %484, %162 : vector<1x256xf32>
      %486 = arith.addf %482, %485 : vector<1x256xf32>
      %cst_82 = arith.constant 0.000000e+00 : f32
      %487 = vector.broadcast %cst_82 : f32 to vector<1x16xf32>
      %488 = vector.extract_strided_slice %486 {offsets = [0, 0], sizes = [1, 240], strides = [1, 1]} : vector<1x256xf32> to vector<1x240xf32>
      %489 = tpu.concatenate %487, %488 in 1 : vector<1x16xf32>, vector<1x240xf32> -> vector<1x256xf32>
      %490 = arith.addf %457, %489 : vector<1x256xf32>
      %cst_83 = arith.constant 0.000000e+00 : f32
      %491 = vector.broadcast %cst_83 : f32 to vector<1x256xf32>
      %c70 = arith.constant 70 : index
      %492 = memref.load %arg2[%c70] : memref<98xf32, #tpu.memory_space<smem>>
      %493 = vector.broadcast %492 : f32 to vector<1x256xf32>
      %494 = arith.mulf %493, %112 : vector<1x256xf32>
      %495 = arith.addf %491, %494 : vector<1x256xf32>
      %c71 = arith.constant 71 : index
      %496 = memref.load %arg2[%c71] : memref<98xf32, #tpu.memory_space<smem>>
      %497 = vector.broadcast %496 : f32 to vector<1x256xf32>
      %498 = arith.mulf %497, %122 : vector<1x256xf32>
      %499 = arith.addf %495, %498 : vector<1x256xf32>
      %c72 = arith.constant 72 : index
      %500 = memref.load %arg2[%c72] : memref<98xf32, #tpu.memory_space<smem>>
      %501 = vector.broadcast %500 : f32 to vector<1x256xf32>
      %502 = arith.mulf %501, %132 : vector<1x256xf32>
      %503 = arith.addf %499, %502 : vector<1x256xf32>
      %c73 = arith.constant 73 : index
      %504 = memref.load %arg2[%c73] : memref<98xf32, #tpu.memory_space<smem>>
      %505 = vector.broadcast %504 : f32 to vector<1x256xf32>
      %506 = arith.mulf %505, %25 : vector<1x256xf32>
      %507 = arith.addf %503, %506 : vector<1x256xf32>
      %c74 = arith.constant 74 : index
      %508 = memref.load %arg2[%c74] : memref<98xf32, #tpu.memory_space<smem>>
      %509 = vector.broadcast %508 : f32 to vector<1x256xf32>
      %510 = arith.mulf %509, %142 : vector<1x256xf32>
      %511 = arith.addf %507, %510 : vector<1x256xf32>
      %c75 = arith.constant 75 : index
      %512 = memref.load %arg2[%c75] : memref<98xf32, #tpu.memory_space<smem>>
      %513 = vector.broadcast %512 : f32 to vector<1x256xf32>
      %514 = arith.mulf %513, %152 : vector<1x256xf32>
      %515 = arith.addf %511, %514 : vector<1x256xf32>
      %c76 = arith.constant 76 : index
      %516 = memref.load %arg2[%c76] : memref<98xf32, #tpu.memory_space<smem>>
      %517 = vector.broadcast %516 : f32 to vector<1x256xf32>
      %518 = arith.mulf %517, %162 : vector<1x256xf32>
      %519 = arith.addf %515, %518 : vector<1x256xf32>
      %520 = arith.addf %490, %519 : vector<1x256xf32>
      %cst_84 = arith.constant 0.000000e+00 : f32
      %521 = vector.broadcast %cst_84 : f32 to vector<1x256xf32>
      %c77 = arith.constant 77 : index
      %522 = memref.load %arg2[%c77] : memref<98xf32, #tpu.memory_space<smem>>
      %523 = vector.broadcast %522 : f32 to vector<1x256xf32>
      %524 = arith.mulf %523, %112 : vector<1x256xf32>
      %525 = arith.addf %521, %524 : vector<1x256xf32>
      %c78 = arith.constant 78 : index
      %526 = memref.load %arg2[%c78] : memref<98xf32, #tpu.memory_space<smem>>
      %527 = vector.broadcast %526 : f32 to vector<1x256xf32>
      %528 = arith.mulf %527, %122 : vector<1x256xf32>
      %529 = arith.addf %525, %528 : vector<1x256xf32>
      %c79 = arith.constant 79 : index
      %530 = memref.load %arg2[%c79] : memref<98xf32, #tpu.memory_space<smem>>
      %531 = vector.broadcast %530 : f32 to vector<1x256xf32>
      %532 = arith.mulf %531, %132 : vector<1x256xf32>
      %533 = arith.addf %529, %532 : vector<1x256xf32>
      %c80 = arith.constant 80 : index
      %534 = memref.load %arg2[%c80] : memref<98xf32, #tpu.memory_space<smem>>
      %535 = vector.broadcast %534 : f32 to vector<1x256xf32>
      %536 = arith.mulf %535, %25 : vector<1x256xf32>
      %537 = arith.addf %533, %536 : vector<1x256xf32>
      %c81 = arith.constant 81 : index
      %538 = memref.load %arg2[%c81] : memref<98xf32, #tpu.memory_space<smem>>
      %539 = vector.broadcast %538 : f32 to vector<1x256xf32>
      %540 = arith.mulf %539, %142 : vector<1x256xf32>
      %541 = arith.addf %537, %540 : vector<1x256xf32>
      %c82 = arith.constant 82 : index
      %542 = memref.load %arg2[%c82] : memref<98xf32, #tpu.memory_space<smem>>
      %543 = vector.broadcast %542 : f32 to vector<1x256xf32>
      %544 = arith.mulf %543, %152 : vector<1x256xf32>
      %545 = arith.addf %541, %544 : vector<1x256xf32>
      %c83 = arith.constant 83 : index
      %546 = memref.load %arg2[%c83] : memref<98xf32, #tpu.memory_space<smem>>
      %547 = vector.broadcast %546 : f32 to vector<1x256xf32>
      %548 = arith.mulf %547, %162 : vector<1x256xf32>
      %549 = arith.addf %545, %548 : vector<1x256xf32>
      %cst_85 = arith.constant 0.000000e+00 : f32
      %550 = vector.broadcast %cst_85 : f32 to vector<1x16xf32>
      %551 = vector.extract_strided_slice %549 {offsets = [0, 16], sizes = [1, 240], strides = [1, 1]} : vector<1x256xf32> to vector<1x240xf32>
      %552 = tpu.concatenate %551, %550 in 1 : vector<1x240xf32>, vector<1x16xf32> -> vector<1x256xf32>
      %553 = arith.addf %520, %552 : vector<1x256xf32>
      %cst_86 = arith.constant 0.000000e+00 : f32
      %554 = vector.broadcast %cst_86 : f32 to vector<1x256xf32>
      %c84 = arith.constant 84 : index
      %555 = memref.load %arg2[%c84] : memref<98xf32, #tpu.memory_space<smem>>
      %556 = vector.broadcast %555 : f32 to vector<1x256xf32>
      %557 = arith.mulf %556, %112 : vector<1x256xf32>
      %558 = arith.addf %554, %557 : vector<1x256xf32>
      %c85 = arith.constant 85 : index
      %559 = memref.load %arg2[%c85] : memref<98xf32, #tpu.memory_space<smem>>
      %560 = vector.broadcast %559 : f32 to vector<1x256xf32>
      %561 = arith.mulf %560, %122 : vector<1x256xf32>
      %562 = arith.addf %558, %561 : vector<1x256xf32>
      %c86 = arith.constant 86 : index
      %563 = memref.load %arg2[%c86] : memref<98xf32, #tpu.memory_space<smem>>
      %564 = vector.broadcast %563 : f32 to vector<1x256xf32>
      %565 = arith.mulf %564, %132 : vector<1x256xf32>
      %566 = arith.addf %562, %565 : vector<1x256xf32>
      %c87 = arith.constant 87 : index
      %567 = memref.load %arg2[%c87] : memref<98xf32, #tpu.memory_space<smem>>
      %568 = vector.broadcast %567 : f32 to vector<1x256xf32>
      %569 = arith.mulf %568, %25 : vector<1x256xf32>
      %570 = arith.addf %566, %569 : vector<1x256xf32>
      %c88 = arith.constant 88 : index
      %571 = memref.load %arg2[%c88] : memref<98xf32, #tpu.memory_space<smem>>
      %572 = vector.broadcast %571 : f32 to vector<1x256xf32>
      %573 = arith.mulf %572, %142 : vector<1x256xf32>
      %574 = arith.addf %570, %573 : vector<1x256xf32>
      %c89 = arith.constant 89 : index
      %575 = memref.load %arg2[%c89] : memref<98xf32, #tpu.memory_space<smem>>
      %576 = vector.broadcast %575 : f32 to vector<1x256xf32>
      %577 = arith.mulf %576, %152 : vector<1x256xf32>
      %578 = arith.addf %574, %577 : vector<1x256xf32>
      %c90 = arith.constant 90 : index
      %579 = memref.load %arg2[%c90] : memref<98xf32, #tpu.memory_space<smem>>
      %580 = vector.broadcast %579 : f32 to vector<1x256xf32>
      %581 = arith.mulf %580, %162 : vector<1x256xf32>
      %582 = arith.addf %578, %581 : vector<1x256xf32>
      %cst_87 = arith.constant 0.000000e+00 : f32
      %583 = vector.broadcast %cst_87 : f32 to vector<1x32xf32>
      %584 = vector.extract_strided_slice %582 {offsets = [0, 32], sizes = [1, 224], strides = [1, 1]} : vector<1x256xf32> to vector<1x224xf32>
      %585 = tpu.concatenate %584, %583 in 1 : vector<1x224xf32>, vector<1x32xf32> -> vector<1x256xf32>
      %586 = arith.addf %553, %585 : vector<1x256xf32>
      %cst_88 = arith.constant 0.000000e+00 : f32
      %587 = vector.broadcast %cst_88 : f32 to vector<1x256xf32>
      %c91 = arith.constant 91 : index
      %588 = memref.load %arg2[%c91] : memref<98xf32, #tpu.memory_space<smem>>
      %589 = vector.broadcast %588 : f32 to vector<1x256xf32>
      %590 = arith.mulf %589, %112 : vector<1x256xf32>
      %591 = arith.addf %587, %590 : vector<1x256xf32>
      %c92 = arith.constant 92 : index
      %592 = memref.load %arg2[%c92] : memref<98xf32, #tpu.memory_space<smem>>
      %593 = vector.broadcast %592 : f32 to vector<1x256xf32>
      %594 = arith.mulf %593, %122 : vector<1x256xf32>
      %595 = arith.addf %591, %594 : vector<1x256xf32>
      %c93 = arith.constant 93 : index
      %596 = memref.load %arg2[%c93] : memref<98xf32, #tpu.memory_space<smem>>
      %597 = vector.broadcast %596 : f32 to vector<1x256xf32>
      %598 = arith.mulf %597, %132 : vector<1x256xf32>
      %599 = arith.addf %595, %598 : vector<1x256xf32>
      %c94 = arith.constant 94 : index
      %600 = memref.load %arg2[%c94] : memref<98xf32, #tpu.memory_space<smem>>
      %601 = vector.broadcast %600 : f32 to vector<1x256xf32>
      %602 = arith.mulf %601, %25 : vector<1x256xf32>
      %603 = arith.addf %599, %602 : vector<1x256xf32>
      %c95 = arith.constant 95 : index
      %604 = memref.load %arg2[%c95] : memref<98xf32, #tpu.memory_space<smem>>
      %605 = vector.broadcast %604 : f32 to vector<1x256xf32>
      %606 = arith.mulf %605, %142 : vector<1x256xf32>
      %607 = arith.addf %603, %606 : vector<1x256xf32>
      %c96 = arith.constant 96 : index
      %608 = memref.load %arg2[%c96] : memref<98xf32, #tpu.memory_space<smem>>
      %609 = vector.broadcast %608 : f32 to vector<1x256xf32>
      %610 = arith.mulf %609, %152 : vector<1x256xf32>
      %611 = arith.addf %607, %610 : vector<1x256xf32>
      %c97 = arith.constant 97 : index
      %612 = memref.load %arg2[%c97] : memref<98xf32, #tpu.memory_space<smem>>
      %613 = vector.broadcast %612 : f32 to vector<1x256xf32>
      %614 = arith.mulf %613, %162 : vector<1x256xf32>
      %615 = arith.addf %611, %614 : vector<1x256xf32>
      %cst_89 = arith.constant 0.000000e+00 : f32
      %616 = vector.broadcast %cst_89 : f32 to vector<1x48xf32>
      %617 = vector.extract_strided_slice %615 {offsets = [0, 48], sizes = [1, 208], strides = [1, 1]} : vector<1x256xf32> to vector<1x208xf32>
      %618 = tpu.concatenate %617, %616 in 1 : vector<1x208xf32>, vector<1x48xf32> -> vector<1x256xf32>
      %619 = arith.addf %586, %618 : vector<1x256xf32>
      %cst_90 = arith.constant 0.000000e+00 : f32
      %620 = vector.broadcast %cst_90 : f32 to vector<1x256xf32>
      %621 = arith.subf %620, %619 : vector<1x256xf32>
      %622 = math.exp %621 : vector<1x256xf32>
      %cst_91 = arith.constant 1.000000e+00 : f32
      %623 = vector.broadcast %cst_91 : f32 to vector<1x256xf32>
      %624 = arith.addf %623, %622 : vector<1x256xf32>
      %625 = tpu.reciprocal %624 : vector<1x256xf32> -> vector<1x256xf32>
      %c0_92 = arith.constant 0 : index
      %c0_93 = arith.constant 0 : index
      %c0_94 = arith.constant 0 : index
      %626 = vector.load %arg4[%c0_92, %c0_93, %c0_94] : memref<1x1x256xf32, #tpu.memory_space<vmem>>, vector<1x1x256xf32>
      %627 = vector.shape_cast %626 : vector<1x1x256xf32> to vector<1x256xf32>
      %628 = vector.shape_cast %625 : vector<1x256xf32> to vector<1x1x256xf32>
      tpu.vector_store %arg4[%c0_92, %c0_93, %c0_94], %628 {strides = array<i32>} : memref<1x1x256xf32, #tpu.memory_space<vmem>>, vector<1x1x256xf32>,
    } else {
    }
    return
  }
  func.func @transform_0(%arg0: i32, %arg1: i32) -> i32 {
    %c0_i32 = arith.constant 0 : i32
    %c0_i32_0 = arith.constant 0 : i32
    return %c0_i32 : i32
  }
  func.func @transform_1(%arg0: i32, %arg1: i32) -> (i32, i32, i32) {
    %c0_i32 = arith.constant 0 : i32
    %c0_i32_0 = arith.constant 0 : i32
    return %arg0, %arg1, %c0_i32 : i32, i32, i32
  }
  func.func @transform_2(%arg0: i32, %arg1: i32) -> (i32, i32, i32) {
    %c0_i32 = arith.constant 0 : i32
    %c0_i32_0 = arith.constant 0 : i32
    %c0_i32_1 = arith.constant 0 : i32
    return %arg0, %c0_i32, %c0_i32_0 : i32, i32, i32
  }
}

</mosaic_0001>

<llo_original>
// kernel: tpu_custom_call.1
$region0: #{tpu_custom_call.1}
  #allocation0 [shape = 'u32[]', space=smem, size = 0x4, offset = 0x4, fixed_abs, tag = 'smem constant byte address 0x4 - core index']
  #allocation1 [shape = 'u32[144,128]{1,0:T(1,128)}', space=vmem, size = 0x12000, scoped, tag = 'internal scratch']
  #allocation2 [shape = 'f32[8,256]{1,0:T(8,128)}', space=vmem, size = 0x2000, scoped, tag = 'scratch operand']
  #allocation3 [shape = 'f32[8,256]{1,0:T(8,128)}', space=vmem, size = 0x2000, scoped, tag = 'scratch operand']
  %s0 = inlined_call_operand.hbm [shape: f32[98], index: 0, kind: input, shape index: {}]
  %s1 = inlined_call_operand.hbm [shape: f32[2,4,256], index: 1, kind: input, shape index: {}]
  %s2 = inlined_call_operand.hbm [shape: f32[2,1,256], index: 2, kind: output, shape index: {}]
  %s3 = sld [smem:[#allocation0]]
  $region57: #{tpu_custom_call.1} parent=0
    _
  %s5 = ssub.s32 1, %s3
  %s6 = scalar_select 0, %s5, %s3
  $region1: #{tpu_custom_call.1} parent=0
    #allocation4 [shape = 'u8[512]{0}', space=smem, size = 0x200, scoped, tag = 'input window, operand 0, single buffered']
    #allocation5 [shape = 's32[2]{0}', space=sflag, size = 0x8, scoped, tag = 'scoped memory for tpu_custom_call.1']
    #allocation6 [shape = 's32[2]{0}', space=sflag, size = 0x8, scoped, tag = 'scoped memory for tpu_custom_call.1']
    #allocation7 [shape = 's32[2]{0}', space=sflag, size = 0x8, scoped, tag = 'scoped memory for tpu_custom_call.1']
    #allocation8 [shape = 'u8[8192]{0}', space=vmem, size = 0x2000, scoped, tag = 'input window, operand 1']
    #allocation9 [shape = 'u8[2048]{0}', space=vmem, size = 0x800, scoped, tag = 'output window, operand 0']
    %7 = vsyncpa [#allocation7], 0
    %8 = vsyncpa [#allocation5], 0
    %s9 = scalar_lea.sflag [#allocation5], 1
    %10 = vsyncpa %s9, 0
    %11 = vsyncpa [#allocation6], 0
    %s12 = scalar_lea.sflag [#allocation6], 1
    %13 = vsyncpa %s12, 0
    loop: start=0, step=1, limit=4
    $region2: #{tpu_custom_call.1} parent=1 // loop_pre_header
      _
    $region3: #{tpu_custom_call.1} parent=1 // loop_header
      %s15 = sphi 0, %s19
      %p16 = scmp.ge.s32.totalorder %s15, 4
      %s22 = sphi 0, %s34
      %s23 = sphi 0, %s30
      %s24 = sphi 0, %s22
      %s25 = sphi 0, %s23
      %s26 = sphi 0, %s24
      %s27 = sphi 0, %s25
      %s35 = sphi 0, %s35
      %s37 = sphi 0, %s35
      %s38 = sphi 0, %s37
      %s52 = sphi 0, %s38
      %s60 = sphi 0, %s62
      %s63 = sphi 0, %s60
      %s64 = sphi 0, %s63
      %s80 = sphi 0, %s64
      %s86 = sphi 0, %s88
      %s89 = sphi 0, %s86
      %s90 = sphi 0, %s89
      %s106 = sphi 0, %s90
    $region4: #{tpu_custom_call.1} parent=1 // loop_header_branch
      %18 = sbr.rel (%p16) target = $region8
    $region5: #{tpu_custom_call.1} parent=1 // loop_body
      %s20 = ssub.s32 %s15, 1
      %s21 = ssub.s32 %s15, 2
      %s28 = sadd.s32 1, %s23
      %p29 = scmp.ge.s32.totalorder %s28, 1
      %s30 = scalar_select %p29, 0, %s28
      %s31 = sadd.s32 1, %s22
      %s32 = scalar_select %p29, %s31, %s22
      %p33 = scmp.ge.s32.totalorder %s32, 2
      %s34 = scalar_select %p33, 0, %s32
      %s36 = sadd.s32 %s35, 1
      %p39 = scmp.eq.s32.totalorder %s15, 1
      %p40 = scmp.ne.s32.totalorder %s35, %s37
      %p41 = scmp.eq.s32.totalorder %s15, 0
      %p42 = por %p40, %p41
      %p43 = scmp.ne.s32.totalorder %s35, %s37
      %p44 = scmp.eq.s32.totalorder %s20, 1
      %p45 = por %p43, %p44
      %p46 = scmp.ne.s32.totalorder %s37, %s38
      %p47 = scmp.eq.s32.totalorder %s20, 0
      %p48 = por %p46, %p47
      %p49 = scmp.ne.s32.totalorder %s37, %s38
      %p50 = scmp.eq.s32.totalorder %s21, 1
      %p51 = por %p49, %p50
      %p53 = scmp.ne.s32.totalorder %s38, %s52
      %p54 = scmp.eq.s32.totalorder %s21, 0
      %p55 = por %p53, %p54
      %s56 = ssub.s32 %s22, %s34
      %s57 = ssub.s32 %s23, %s30
      %s58 = sor.u32 %s56, %s57
      %p59 = scmp.eq.s32.totalorder %s58, 0
      %s61 = sadd.s32 %s60, 1
      %s62 = scalar_select %p59, %s60, %s61
      %p65 = pneg %p59
      %p66 = scmp.eq.s32.totalorder %s15, 1
      %p67 = por %p65, %p66
      %p68 = scmp.ne.s32.totalorder %s60, %s63
      %p69 = scmp.eq.s32.totalorder %s15, 0
      %p70 = por %p68, %p69
      %p71 = scmp.ne.s32.totalorder %s60, %s63
      %p72 = scmp.eq.s32.totalorder %s20, 1
      %p73 = por %p71, %p72
      %p74 = scmp.ne.s32.totalorder %s63, %s64
      %p75 = scmp.eq.s32.totalorder %s20, 0
      %p76 = por %p74, %p75
      %p77 = scmp.ne.s32.totalorder %s63, %s64
      %p78 = scmp.eq.s32.totalorder %s21, 1
      %p79 = por %p77, %p78
      %p81 = scmp.ne.s32.totalorder %s64, %s80
      %p82 = scmp.eq.s32.totalorder %s21, 0
      %p83 = por %p81, %p82
      %s84 = ssub.s32 %s22, %s34
      %p85 = scmp.eq.s32.totalorder %s84, 0
      %s87 = sadd.s32 %s86, 1
      %s88 = scalar_select %p85, %s86, %s87
      %p91 = pneg %p85
      %p92 = scmp.eq.s32.totalorder %s15, 1
      %p93 = por %p91, %p92
      %p94 = scmp.ne.s32.totalorder %s86, %s89
      %p95 = scmp.eq.s32.totalorder %s15, 0
      %p96 = por %p94, %p95
      %p97 = scmp.ne.s32.totalorder %s86, %s89
      %p98 = scmp.eq.s32.totalorder %s20, 1
      %p99 = por %p97, %p98
      %p100 = scmp.ne.s32.totalorder %s89, %s90
      %p101 = scmp.eq.s32.totalorder %s20, 0
      %p102 = por %p100, %p101
      %p103 = scmp.ne.s32.totalorder %s89, %s90
      %p104 = scmp.eq.s32.totalorder %s21, 1
      %p105 = por %p103, %p104
      %p107 = scmp.ne.s32.totalorder %s90, %s106
      %p108 = scmp.eq.s32.totalorder %s21, 0
      %p109 = por %p107, %p108
      %p110 = scmp.le.s32.totalorder 1, %s15
      %p111 = scmp.lt.s32.totalorder %s15, 3
      %p112 = pnand %p110, %p111
      %p113 = pneg %p112
      // Predicated region
      $region9: #{tpu_custom_call.1} parent=5 // pred_check
        _
      $region10: #{tpu_custom_call.1} parent=5 // pred_check_branch
        %115 = sbr.rel (%p112) target = $region12
      $region11: #{tpu_custom_call.1} parent=5 // pred_region
        %s116 = ssub.s32 %s15, 1
        // Predicated region
        $region13: #{tpu_custom_call.1} parent=11 // pred_check
          %p117 = pneg %p48
        $region14: #{tpu_custom_call.1} parent=11 // pred_check_branch
          %119 = sbr.rel (%p117) target = $region16
        $region15: #{tpu_custom_call.1} parent=11 // pred_region
          %s121 = ssub.s32 16, 16
          %122 = vsyncadd [#allocation7], %s121
          %125 = dma.hbm_to_smem %s0, 16, [#allocation4], [#allocation7]
        $region16: #{tpu_custom_call.1} parent=11 // pred_fallthru
          _
      $region12: #{tpu_custom_call.1} parent=5 // pred_fallthru
        _
      %p126 = scmp.lt.s32.totalorder %s15, 2
      // Predicated region
      $region17: #{tpu_custom_call.1} parent=5 // pred_check
        %p127 = pneg %p126
      $region18: #{tpu_custom_call.1} parent=5 // pred_check_branch
        %129 = sbr.rel (%p127) target = $region20
      $region19: #{tpu_custom_call.1} parent=5 // pred_region
        // Predicated region
        $region21: #{tpu_custom_call.1} parent=19 // pred_check
          %p130 = pneg %p70
        $region22: #{tpu_custom_call.1} parent=19 // pred_check_branch
          %132 = sbr.rel (%p130) target = $region24
        $region23: #{tpu_custom_call.1} parent=19 // pred_region
          %s133 = sand.u32 %s60, 1
          %s134 = scalar_lea.sflag [#allocation5], %s133
          %s135 = sand.u32 %s60, 1
          %s136 = smul.addr %s135, 8
          %s137 = scalar_lea.vmem [#allocation8], %s136
          %s139 = ssub.s32 128, 128
          %140 = vsyncadd %s134, %s139
          %s141 = smul.addr %s23, 2
          %s142 = smul.addr %s22, 2
          %s143 = sadd.s32 %s141, %s142
          %s144 = smul.addr %s143, 64
          %s145 = scalar_lea.hbm %s1, %s144
          %s147 = sshll.u32 %s137, 4
          %s148 = int_to_ptr.vmem [resolvable:$true] %s147
          %150 = dma.hbm_to_vmem [thread:$0]  %s145, 128, %s148, %s134
        $region24: #{tpu_custom_call.1} parent=19 // pred_fallthru
          _
      $region20: #{tpu_custom_call.1} parent=5 // pred_fallthru
        _
      %p151 = scmp.le.s32.totalorder 1, %s15
      %p152 = scmp.lt.s32.totalorder %s15, 3
      %p153 = pnand %p151, %p152
      %p154 = pneg %p153
      // Predicated region
      $region25: #{tpu_custom_call.1} parent=5 // pred_check
        _
      $region26: #{tpu_custom_call.1} parent=5 // pred_check_branch
        %156 = sbr.rel (%p153) target = $region28
      $region27: #{tpu_custom_call.1} parent=5 // pred_region
        %s157 = ssub.s32 %s15, 1
        // Predicated region
        $region29: #{tpu_custom_call.1} parent=27 // pred_check
          %p158 = pneg %p48
        $region30: #{tpu_custom_call.1} parent=27 // pred_check_branch
          %160 = sbr.rel (%p158) target = $region32
        $region31: #{tpu_custom_call.1} parent=27 // pred_region
          %161 = dma.done [#allocation7], 16
        $region32: #{tpu_custom_call.1} parent=27 // pred_fallthru
          _
        %s162 = sand.u32 %s63, 1
        %s163 = scalar_lea.sflag [#allocation5], %s162
        %s164 = sand.u32 %s63, 1
        %s165 = smul.addr %s164, 8
        %s166 = scalar_lea.vmem [#allocation8], %s165
        // Predicated region
        $region33: #{tpu_custom_call.1} parent=27 // pred_check
          %p167 = pneg %p76
        $region34: #{tpu_custom_call.1} parent=27 // pred_check_branch
          %169 = sbr.rel (%p167) target = $region36
        $region35: #{tpu_custom_call.1} parent=27 // pred_region
          %170 = dma.done %s163, 128
        $region36: #{tpu_custom_call.1} parent=27 // pred_fallthru
          _
        %171 = sfence
        %p172 = pneg %p48
        %p173 = pneg %p45
        %s174 = sand.u32 %s63, 1
        %s175 = scalar_lea.sflag [#allocation5], %s174
        %s176 = sand.u32 %s63, 1
        %s177 = smul.addr %s176, 8
        %s178 = scalar_lea.vmem [#allocation8], %s177
        %p179 = pneg %p76
        %p180 = pneg %p73
        %p181 = pneg %p102
        %p182 = pneg %p99
        %s183 = sand.u32 %s89, 1
        %s184 = scalar_lea.sflag [#allocation6], %s183
        %s185 = sand.u32 %s89, 1
        %s186 = smul.addr %s185, 2
        %s187 = scalar_lea.vmem [#allocation9], %s186
        %p188 = scmp.eq.s32.totalorder %s25, 0
        // Predicated region
        $region37: #{tpu_custom_call.1} parent=27 // pred_check
          %p189 = pneg %p188
        $region38: #{tpu_custom_call.1} parent=27 // pred_check_branch
          %191 = sbr.rel (%p189) target = $region40
        $region39: #{tpu_custom_call.1} parent=27 // pred_region
          %192 = vst [vmem:[#allocation2] sm:$0xff] 0.0
          %193 = vst [vmem:[#allocation2 + $0x8] sm:$0xff] 0.0
          %194 = vst [vmem:[#allocation3] sm:$0xff] -inf
          %195 = vst [vmem:[#allocation3 + $0x8] sm:$0xff] -inf
        $region40: #{tpu_custom_call.1} parent=27 // pred_fallthru
          _
        %v196 = vld [vmem:[%s166] sm:$0xff]
        %v197 = vld [vmem:[#allocation2] ss:$8 sm:$0x3]
        %v199 = vcombine.high %v196, %v196
        %vm201 = vcmask 1043456
        %v202 = vsel %vm201, %v196, 0.0
        %v203 = vrot.slane %v202, 4
        %v204 = vadd.f32 %v202, %v203
        %v205 = vrot.slane %v204, 2
        %v206 = vadd.f32 %v204, %v205
        %v207 = vrot.slane %v206, 1
        %v208 = vadd.f32 %v206, %v207
        %v209 = vsel %vm201, %v199, 0.0
        %v210 = vrot.slane %v209, 4
        %v211 = vadd.f32 %v209, %v210
        %v212 = vrot.slane %v211, 2
        %v213 = vadd.f32 %v211, %v212
        %v214 = vrot.slane %v213, 1
        %v215 = vadd.f32 %v213, %v214
        %v218 = vcombine.low %v208, %v215
        %v220 = vunpack.c.l.s4 1966171168
        %v221 = vunpack.c.0.s8 %v220
        %v222 = vlaneseq
        %v223 = vshrl.u32 %v222, 7
        %v224 = vsub.s32 %v221, %v223
        %v225 = vrot.slane %v218, %v224
        %v227 = vunpack.c.l.s4 1966171168
        %v228 = vunpack.c.0.s8 %v227
        %v229 = vlaneseq
        %v230 = vshrl.u32 %v229, 7
        %v231 = vsub.s32 %v228, %v230
        %v232 = vrot.slane %v225, %v231
        %v234 = vadd.f32 %v197, %v232
        %v235 = vlaneseq
        %vm236 = vcmp.ge.s32.totalorder %v235, 0
        %vm237 = vcmp.lt.s32.totalorder %v235, 256
        %vm238 = vmand %vm236, %vm237
        %239 = vst.msk [vmem:[#allocation2] ss:$8 sm:$0x3] %vm238, %v234
        %240 = vst.msk [vmem:[#allocation2] ss:$8 sm:$0x0] %vm238, %v234
        %v241 = vld [vmem:[#allocation3] ss:$8 sm:$0x3]
        %v242 = vsel %vm201, %v196, -inf
        %v243 = vrot.slane %v242, 4
        %v244 = vmax.f32 %v242, %v243
        %v245 = vrot.slane %v244, 2
        %v246 = vmax.f32 %v244, %v245
        %v247 = vrot.slane %v246, 1
        %v248 = vmax.f32 %v246, %v247
        %v249 = vsel %vm201, %v199, -inf
        %v250 = vrot.slane %v249, 4
        %v251 = vmax.f32 %v249, %v250
        %v252 = vrot.slane %v251, 2
        %v253 = vmax.f32 %v251, %v252
        %v254 = vrot.slane %v253, 1
        %v255 = vmax.f32 %v253, %v254
        %v258 = vcombine.low %v248, %v255
        %v260 = vunpack.c.l.s4 1966171168
        %v261 = vunpack.c.0.s8 %v260
        %v262 = vlaneseq
        %v263 = vshrl.u32 %v262, 7
        %v264 = vsub.s32 %v261, %v263
        %v265 = vrot.slane %v258, %v264
        %v267 = vunpack.c.l.s4 1966171168
        %v268 = vunpack.c.0.s8 %v267
        %v269 = vlaneseq
        %v270 = vshrl.u32 %v269, 7
        %v271 = vsub.s32 %v268, %v270
        %v272 = vrot.slane %v265, %v271
        %v274 = vmax.f32 %v241, %v272
        %275 = vst.msk [vmem:[#allocation3] ss:$8 sm:$0x3] %vm238, %v274
        %276 = vst.msk [vmem:[#allocation3] ss:$8 sm:$0x0] %vm238, %v274
        // Predicated region
        $region41: #{tpu_custom_call.1} parent=27 // pred_check
          %p277 = pneg %p188
        $region42: #{tpu_custom_call.1} parent=27 // pred_check_branch
          %279 = sbr.rel (%p277) target = $region44
        $region43: #{tpu_custom_call.1} parent=27 // pred_region
          %v280 = vld [vmem:[#allocation2] sm:$0xff]
          %v281 = vld [vmem:[#allocation2 + $0x8] sm:$0xff]
          %v282 = vrot.slane %v280, 4
          %v283 = vadd.f32 %v280, %v282
          %v284 = vrot.slane %v283, 2
          %v285 = vadd.f32 %v283, %v284
          %v286 = vrot.slane %v285, 1
          %v287 = vadd.f32 %v285, %v286
          %v288 = vrot.slane %v281, 4
          %v289 = vadd.f32 %v281, %v288
          %v290 = vrot.slane %v289, 2
          %v291 = vadd.f32 %v289, %v290
          %v292 = vrot.slane %v291, 1
          %v293 = vadd.f32 %v291, %v292
          %v294 = vmul.f32 %v287, 0.25
          %v295 = vmul.f32 %v293, 0.25
          %v296 = vld [vmem:[#allocation3] sm:$0xff]
          %v297 = vld [vmem:[#allocation3 + $0x8] sm:$0xff]
          %v298 = vrot.slane %v296, 4
          %v299 = vmax.f32 %v296, %v298
          %v300 = vrot.slane %v299, 2
          %v301 = vmax.f32 %v299, %v300
          %v302 = vrot.slane %v301, 1
          %v303 = vmax.f32 %v301, %v302
          %v304 = vrot.slane %v297, 4
          %v305 = vmax.f32 %v297, %v304
          %v306 = vrot.slane %v305, 2
          %v307 = vmax.f32 %v305, %v306
          %v308 = vrot.slane %v307, 1
          %v309 = vmax.f32 %v307, %v308
          %v310 = vlaneseq
          %v311 = vand.u32 %v310, 127
          %v312 = vadd.s32 %v311, 128
          %vm313 = vcmp.lt.s32.totalorder %v311, 0
          %v314 = vsub.s32 0, %v311
          %v315 = vsel %vm313, %v314, %v311
          %v316 = vshrl.u32 %v315, 4
          %v317 = vand.u32 %v315, 15
          %v318 = vsub.s32 0, %v317
          %v319 = vsel %vm313, %v318, %v317
          %vm320 = vcmp.lt.s32.totalorder %v312, 0
          %v321 = vsub.s32 0, %v312
          %v322 = vsel %vm320, %v321, %v312
          %v323 = vshrl.u32 %v322, 4
          %v324 = vand.u32 %v322, 15
          %v325 = vsub.s32 0, %v324
          %v326 = vsel %vm320, %v325, %v324
          %vm327 = vcmp.ne.s32.totalorder %v319, 0
          %vm328 = vcmp.ne.s32.totalorder %v326, 0
          %vm329 = vcmp.lt.s32.totalorder %v319, 0
          %vm330 = vcmp.lt.s32.totalorder %v326, 0
          %vm331 = vmand %vm329, %vm327
          %vm332 = vmand %vm330, %vm328
          %v333 = vadd.s32 %v319, 16
          %v334 = vadd.s32 %v326, 16
          %v335 = vsel %vm331, %v333, %v319
          %v336 = vsel %vm332, %v334, %v326
          %339 = vrot.lane.b32.xlu0 %v294, 3
          %v340 = vpop.permute.xlu0 %339
          %341 = vrot.lane.b32.xlu0 %v295, 3
          %v342 = vpop.permute.xlu0 %341
          %vm343 = vcmask 23552
          %v344 = vsel %vm343, %v340, %v342
          %v347 = vsel %vm343, 0.0, %v340
          %vm348 = vcmp.ge.s32.totalorder %v335, 3
          %vm349 = vcmp.ge.s32.totalorder %v336, 3
          %vm350 = vcmp.lt.s32.totalorder %v335, 19
          %vm351 = vcmp.lt.s32.totalorder %v336, 19
          %vm352 = vmand %vm348, %vm350
          %vm353 = vmand %vm349, %vm351
          %v354 = vsel %vm352, %v347, 0.0
          %v355 = vsel %vm353, %v344, 0.0
          %356 = vrot.lane.b32.xlu0 %v294, 2
          %v357 = vpop.permute.xlu0 %356
          %358 = vrot.lane.b32.xlu0 %v295, 2
          %v359 = vpop.permute.xlu0 %358
          %vm360 = vcmask 15360
          %v361 = vsel %vm360, %v357, %v359
          %v364 = vsel %vm360, 0.0, %v357
          %vm365 = vcmp.ge.s32.totalorder %v335, 2
          %vm366 = vcmp.ge.s32.totalorder %v336, 2
          %vm367 = vcmp.lt.s32.totalorder %v335, 18
          %vm368 = vcmp.lt.s32.totalorder %v336, 18
          %vm369 = vmand %vm365, %vm367
          %vm370 = vmand %vm366, %vm368
          %v371 = vsel %vm369, %v364, 0.0
          %v372 = vsel %vm370, %v361, 0.0
          %373 = vrot.lane.b32.xlu0 %v294, 1
          %v374 = vpop.permute.xlu0 %373
          %375 = vrot.lane.b32.xlu0 %v295, 1
          %v376 = vpop.permute.xlu0 %375
          %vm377 = vcmask 7168
          %v378 = vsel %vm377, %v374, %v376
          %v381 = vsel %vm377, 0.0, %v374
          %vm382 = vcmp.ge.s32.totalorder %v335, 1
          %vm383 = vcmp.ge.s32.totalorder %v336, 1
          %vm384 = vcmp.lt.s32.totalorder %v335, 17
          %vm385 = vcmp.lt.s32.totalorder %v336, 17
          %vm386 = vmand %vm382, %vm384
          %vm387 = vmand %vm383, %vm385
          %v388 = vsel %vm386, %v381, 0.0
          %v389 = vsel %vm387, %v378, 0.0
          %390 = vrot.lane.b32.xlu0 %v294, 127
          %v391 = vpop.permute.xlu0 %390
          %392 = vrot.lane.b32.xlu0 %v295, 127
          %v393 = vpop.permute.xlu0 %392
          %vm394 = vcmask 1039360
          %v395 = vsel %vm394, %v391, %v393
          %v398 = vsel %vm394, %v393, 0.0
          %vm399 = vcmp.ge.s32.totalorder %v335, 4294967295
          %vm400 = vcmp.ge.s32.totalorder %v336, 4294967295
          %vm401 = vcmp.lt.s32.totalorder %v335, 15
          %vm402 = vcmp.lt.s32.totalorder %v336, 15
          %vm403 = vmand %vm399, %vm401
          %vm404 = vmand %vm400, %vm402
          %v405 = vsel %vm403, %v395, 0.0
          %v406 = vsel %vm404, %v398, 0.0
          %407 = vrot.lane.b32.xlu0 %v294, 126
          %v408 = vpop.permute.xlu0 %407
          %409 = vrot.lane.b32.xlu0 %v295, 126
          %v410 = vpop.permute.xlu0 %409
          %vm411 = vcmask 1031168
          %v412 = vsel %vm411, %v408, %v410
          %v415 = vsel %vm411, %v410, 0.0
          %vm416 = vcmp.ge.s32.totalorder %v335, 4294967294
          %vm417 = vcmp.ge.s32.totalorder %v336, 4294967294
          %vm418 = vcmp.lt.s32.totalorder %v335, 14
          %vm419 = vcmp.lt.s32.totalorder %v336, 14
          %vm420 = vmand %vm416, %vm418
          %vm421 = vmand %vm417, %vm419
          %v422 = vsel %vm420, %v412, 0.0
          %v423 = vsel %vm421, %v415, 0.0
          %424 = vrot.lane.b32.xlu0 %v294, 125
          %v425 = vpop.permute.xlu0 %424
          %426 = vrot.lane.b32.xlu0 %v295, 125
          %v427 = vpop.permute.xlu0 %426
          %vm428 = vcmask 1022976
          %v429 = vsel %vm428, %v425, %v427
          %v432 = vsel %vm428, %v427, 0.0
          %vm433 = vcmp.ge.s32.totalorder %v335, 4294967293
          %vm434 = vcmp.ge.s32.totalorder %v336, 4294967293
          %vm435 = vcmp.lt.s32.totalorder %v335, 13
          %vm436 = vcmp.lt.s32.totalorder %v336, 13
          %vm437 = vmand %vm433, %vm435
          %vm438 = vmand %vm434, %vm436
          %v439 = vsel %vm437, %v429, 0.0
          %v440 = vsel %vm438, %v432, 0.0
          %443 = vrot.lane.b32.xlu0 %v303, 3
          %v444 = vpop.permute.xlu0 %443
          %445 = vrot.lane.b32.xlu0 %v309, 3
          %v446 = vpop.permute.xlu0 %445
          %v447 = vsel %vm343, %v444, %v446
          %v450 = vsel %vm343, 0.0, %v444
          %v451 = vsel %vm352, %v450, 0.0
          %v452 = vsel %vm353, %v447, 0.0
          %453 = vrot.lane.b32.xlu0 %v303, 2
          %v454 = vpop.permute.xlu0 %453
          %455 = vrot.lane.b32.xlu0 %v309, 2
          %v456 = vpop.permute.xlu0 %455
          %v457 = vsel %vm360, %v454, %v456
          %v460 = vsel %vm360, 0.0, %v454
          %v461 = vsel %vm369, %v460, 0.0
          %v462 = vsel %vm370, %v457, 0.0
          %463 = vrot.lane.b32.xlu0 %v303, 1
          %v464 = vpop.permute.xlu0 %463
          %465 = vrot.lane.b32.xlu0 %v309, 1
          %v466 = vpop.permute.xlu0 %465
          %v467 = vsel %vm377, %v464, %v466
          %v470 = vsel %vm377, 0.0, %v464
          %v471 = vsel %vm386, %v470, 0.0
          %v472 = vsel %vm387, %v467, 0.0
          %473 = vrot.lane.b32.xlu0 %v303, 127
          %v474 = vpop.permute.xlu0 %473
          %475 = vrot.lane.b32.xlu0 %v309, 127
          %v476 = vpop.permute.xlu0 %475
          %v477 = vsel %vm394, %v474, %v476
          %v480 = vsel %vm394, %v476, 0.0
          %v481 = vsel %vm403, %v477, 0.0
          %v482 = vsel %vm404, %v480, 0.0
          %483 = vrot.lane.b32.xlu0 %v303, 126
          %v484 = vpop.permute.xlu0 %483
          %485 = vrot.lane.b32.xlu0 %v309, 126
          %v486 = vpop.permute.xlu0 %485
          %v487 = vsel %vm411, %v484, %v486
          %v490 = vsel %vm411, %v486, 0.0
          %v491 = vsel %vm420, %v487, 0.0
          %v492 = vsel %vm421, %v490, 0.0
          %493 = vrot.lane.b32.xlu0 %v303, 125
          %v494 = vpop.permute.xlu0 %493
          %495 = vrot.lane.b32.xlu0 %v309, 125
          %v496 = vpop.permute.xlu0 %495
          %v497 = vsel %vm428, %v494, %v496
          %v500 = vsel %vm428, %v496, 0.0
          %v501 = vsel %vm437, %v497, 0.0
          %v502 = vsel %vm438, %v500, 0.0
          %s503 = sld [smem:[#allocation4]]
          %v504 = vstv %s503
          %v505 = vmul.f32 %v504, %v354
          %v506 = vmul.f32 %v504, %v355
          %v507 = vadd.f32 %v505, 0.0
          %v508 = vadd.f32 %v506, 0.0
          %s509 = sld [smem:[#allocation4 + $0x1]]
          %v510 = vstv %s509
          %v511 = vmul.f32 %v510, %v371
          %v512 = vmul.f32 %v510, %v372
          %v513 = vadd.f32 %v507, %v511
          %v514 = vadd.f32 %v508, %v512
          %s515 = sld [smem:[#allocation4 + $0x2]]
          %v516 = vstv %s515
          %v517 = vmul.f32 %v516, %v388
          %v518 = vmul.f32 %v516, %v389
          %v519 = vadd.f32 %v513, %v517
          %v520 = vadd.f32 %v514, %v518
          %s521 = sld [smem:[#allocation4 + $0x3]]
          %v522 = vstv %s521
          %v523 = vmul.f32 %v522, %v294
          %v524 = vmul.f32 %v522, %v295
          %v525 = vadd.f32 %v519, %v523
          %v526 = vadd.f32 %v520, %v524
          %s527 = sld [smem:[#allocation4 + $0x4]]
          %v528 = vstv %s527
          %v529 = vmul.f32 %v528, %v405
          %v530 = vmul.f32 %v528, %v406
          %v531 = vadd.f32 %v525, %v529
          %v532 = vadd.f32 %v526, %v530
          %s533 = sld [smem:[#allocation4 + $0x5]]
          %v534 = vstv %s533
          %v535 = vmul.f32 %v534, %v422
          %v536 = vmul.f32 %v534, %v423
          %v537 = vadd.f32 %v531, %v535
          %v538 = vadd.f32 %v532, %v536
          %s539 = sld [smem:[#allocation4 + $0x6]]
          %v540 = vstv %s539
          %v541 = vmul.f32 %v540, %v439
          %v542 = vmul.f32 %v540, %v440
          %v543 = vadd.f32 %v537, %v541
          %v544 = vadd.f32 %v538, %v542
          %547 = vrot.lane.b32.xlu0 %v543, 48
          %v548 = vpop.permute.xlu0 %547
          %549 = vrot.lane.b32.xlu0 %v544, 48
          %v550 = vpop.permute.xlu0 %549
          %vm551 = vcmask 392192
          %v552 = vsel %vm551, %v548, %v550
          %v555 = vsel %vm551, 0.0, %v548
          %v556 = vadd.f32 %v555, 0.0
          %v557 = vadd.f32 %v552, 0.0
          %s558 = sld [smem:[#allocation4 + $0x7]]
          %v559 = vstv %s558
          %v560 = vmul.f32 %v559, %v354
          %v561 = vmul.f32 %v559, %v355
          %v562 = vadd.f32 %v560, 0.0
          %v563 = vadd.f32 %v561, 0.0
          %s564 = sld [smem:[#allocation4 + $0x8]]
          %v565 = vstv %s564
          %v566 = vmul.f32 %v565, %v371
          %v567 = vmul.f32 %v565, %v372
          %v568 = vadd.f32 %v562, %v566
          %v569 = vadd.f32 %v563, %v567
          %s570 = sld [smem:[#allocation4 + $0x9]]
          %v571 = vstv %s570
          %v572 = vmul.f32 %v571, %v388
          %v573 = vmul.f32 %v571, %v389
          %v574 = vadd.f32 %v568, %v572
          %v575 = vadd.f32 %v569, %v573
          %s576 = sld [smem:[#allocation4 + $0xa]]
          %v577 = vstv %s576
          %v578 = vmul.f32 %v577, %v294
          %v579 = vmul.f32 %v577, %v295
          %v580 = vadd.f32 %v574, %v578
          %v581 = vadd.f32 %v575, %v579
          %s582 = sld [smem:[#allocation4 + $0xb]]
          %v583 = vstv %s582
          %v584 = vmul.f32 %v583, %v405
          %v585 = vmul.f32 %v583, %v406
          %v586 = vadd.f32 %v580, %v584
          %v587 = vadd.f32 %v581, %v585
          %s588 = sld [smem:[#allocation4 + $0xc]]
          %v589 = vstv %s588
          %v590 = vmul.f32 %v589, %v422
          %v591 = vmul.f32 %v589, %v423
          %v592 = vadd.f32 %v586, %v590
          %v593 = vadd.f32 %v587, %v591
          %s594 = sld [smem:[#allocation4 + $0xd]]
          %v595 = vstv %s594
          %v596 = vmul.f32 %v595, %v439
          %v597 = vmul.f32 %v595, %v440
          %v598 = vadd.f32 %v592, %v596
          %v599 = vadd.f32 %v593, %v597
          %602 = vrot.lane.b32.xlu0 %v598, 32
          %v603 = vpop.permute.xlu0 %602
          %604 = vrot.lane.b32.xlu0 %v599, 32
          %v605 = vpop.permute.xlu0 %604
          %vm606 = vcmask 261120
          %v607 = vsel %vm606, %v603, %v605
          %v610 = vsel %vm606, 0.0, %v603
          %v611 = vadd.f32 %v556, %v610
          %v612 = vadd.f32 %v557, %v607
          %s613 = sld [smem:[#allocation4 + $0xe]]
          %v614 = vstv %s613
          %v615 = vmul.f32 %v614, %v354
          %v616 = vmul.f32 %v614, %v355
          %v617 = vadd.f32 %v615, 0.0
          %v618 = vadd.f32 %v616, 0.0
          %s619 = sld [smem:[#allocation4 + $0xf]]
          %v620 = vstv %s619
          %v621 = vmul.f32 %v620, %v371
          %v622 = vmul.f32 %v620, %v372
          %v623 = vadd.f32 %v617, %v621
          %v624 = vadd.f32 %v618, %v622
          %s625 = sld [smem:[#allocation4 + $0x10]]
          %v626 = vstv %s625
          %v627 = vmul.f32 %v626, %v388
          %v628 = vmul.f32 %v626, %v389
          %v629 = vadd.f32 %v623, %v627
          %v630 = vadd.f32 %v624, %v628
          %s631 = sld [smem:[#allocation4 + $0x11]]
          %v632 = vstv %s631
          %v633 = vmul.f32 %v632, %v294
          %v634 = vmul.f32 %v632, %v295
          %v635 = vadd.f32 %v629, %v633
          %v636 = vadd.f32 %v630, %v634
          %s637 = sld [smem:[#allocation4 + $0x12]]
          %v638 = vstv %s637
          %v639 = vmul.f32 %v638, %v405
          %v640 = vmul.f32 %v638, %v406
          %v641 = vadd.f32 %v635, %v639
          %v642 = vadd.f32 %v636, %v640
          %s643 = sld [smem:[#allocation4 + $0x13]]
          %v644 = vstv %s643
          %v645 = vmul.f32 %v644, %v422
          %v646 = vmul.f32 %v644, %v423
          %v647 = vadd.f32 %v641, %v645
          %v648 = vadd.f32 %v642, %v646
          %s649 = sld [smem:[#allocation4 + $0x14]]
          %v650 = vstv %s649
          %v651 = vmul.f32 %v650, %v439
          %v652 = vmul.f32 %v650, %v440
          %v653 = vadd.f32 %v647, %v651
          %v654 = vadd.f32 %v648, %v652
          %657 = vrot.lane.b32.xlu0 %v653, 16
          %v658 = vpop.permute.xlu0 %657
          %659 = vrot.lane.b32.xlu0 %v654, 16
          %v660 = vpop.permute.xlu0 %659
          %vm661 = vcmask 130048
          %v662 = vsel %vm661, %v658, %v660
          %v665 = vsel %vm661, 0.0, %v658
          %v666 = vadd.f32 %v611, %v665
          %v667 = vadd.f32 %v612, %v662
          %s668 = sld [smem:[#allocation4 + $0x15]]
          %v669 = vstv %s668
          %v670 = vmul.f32 %v669, %v354
          %v671 = vmul.f32 %v669, %v355
          %v672 = vadd.f32 %v670, 0.0
          %v673 = vadd.f32 %v671, 0.0
          %s674 = sld [smem:[#allocation4 + $0x16]]
          %v675 = vstv %s674
          %v676 = vmul.f32 %v675, %v371
          %v677 = vmul.f32 %v675, %v372
          %v678 = vadd.f32 %v672, %v676
          %v679 = vadd.f32 %v673, %v677
          %s680 = sld [smem:[#allocation4 + $0x17]]
          %v681 = vstv %s680
          %v682 = vmul.f32 %v681, %v388
          %v683 = vmul.f32 %v681, %v389
          %v684 = vadd.f32 %v678, %v682
          %v685 = vadd.f32 %v679, %v683
          %s686 = sld [smem:[#allocation4 + $0x18]]
          %v687 = vstv %s686
          %v688 = vmul.f32 %v687, %v294
          %v689 = vmul.f32 %v687, %v295
          %v690 = vadd.f32 %v684, %v688
          %v691 = vadd.f32 %v685, %v689
          %s692 = sld [smem:[#allocation4 + $0x19]]
          %v693 = vstv %s692
          %v694 = vmul.f32 %v693, %v405
          %v695 = vmul.f32 %v693, %v406
          %v696 = vadd.f32 %v690, %v694
          %v697 = vadd.f32 %v691, %v695
          %s698 = sld [smem:[#allocation4 + $0x1a]]
          %v699 = vstv %s698
          %v700 = vmul.f32 %v699, %v422
          %v701 = vmul.f32 %v699, %v423
          %v702 = vadd.f32 %v696, %v700
          %v703 = vadd.f32 %v697, %v701
          %s704 = sld [smem:[#allocation4 + $0x1b]]
          %v705 = vstv %s704
          %v706 = vmul.f32 %v705, %v439
          %v707 = vmul.f32 %v705, %v440
          %v708 = vadd.f32 %v702, %v706
          %v709 = vadd.f32 %v703, %v707
          %v710 = vadd.f32 %v666, %v708
          %v711 = vadd.f32 %v667, %v709
          %s712 = sld [smem:[#allocation4 + $0x1c]]
          %v713 = vstv %s712
          %v714 = vmul.f32 %v713, %v354
          %v715 = vmul.f32 %v713, %v355
          %v716 = vadd.f32 %v714, 0.0
          %v717 = vadd.f32 %v715, 0.0
          %s718 = sld [smem:[#allocation4 + $0x1d]]
          %v719 = vstv %s718
          %v720 = vmul.f32 %v719, %v371
          %v721 = vmul.f32 %v719, %v372
          %v722 = vadd.f32 %v716, %v720
          %v723 = vadd.f32 %v717, %v721
          %s724 = sld [smem:[#allocation4 + $0x1e]]
          %v725 = vstv %s724
          %v726 = vmul.f32 %v725, %v388
          %v727 = vmul.f32 %v725, %v389
          %v728 = vadd.f32 %v722, %v726
          %v729 = vadd.f32 %v723, %v727
          %s730 = sld [smem:[#allocation4 + $0x1f]]
          %v731 = vstv %s730
          %v732 = vmul.f32 %v731, %v294
          %v733 = vmul.f32 %v731, %v295
          %v734 = vadd.f32 %v728, %v732
          %v735 = vadd.f32 %v729, %v733
          %s736 = sld [smem:[#allocation4 + $0x20]]
          %v737 = vstv %s736
          %v738 = vmul.f32 %v737, %v405
          %v739 = vmul.f32 %v737, %v406
          %v740 = vadd.f32 %v734, %v738
          %v741 = vadd.f32 %v735, %v739
          %s742 = sld [smem:[#allocation4 + $0x21]]
          %v743 = vstv %s742
          %v744 = vmul.f32 %v743, %v422
          %v745 = vmul.f32 %v743, %v423
          %v746 = vadd.f32 %v740, %v744
          %v747 = vadd.f32 %v741, %v745
          %s748 = sld [smem:[#allocation4 + $0x22]]
          %v749 = vstv %s748
          %v750 = vmul.f32 %v749, %v439
          %v751 = vmul.f32 %v749, %v440
          %v752 = vadd.f32 %v746, %v750
          %v753 = vadd.f32 %v747, %v751
          %756 = vrot.lane.b32.xlu0 %v752, 112
          %v757 = vpop.permute.xlu0 %756
          %758 = vrot.lane.b32.xlu0 %v753, 112
          %v759 = vpop.permute.xlu0 %758
          %vm760 = vcmask 916480
          %v761 = vsel %vm760, %v757, %v759
          %v764 = vsel %vm760, %v759, 0.0
          %v765 = vadd.f32 %v710, %v761
          %v766 = vadd.f32 %v711, %v764
          %s767 = sld [smem:[#allocation4 + $0x23]]
          %v768 = vstv %s767
          %v769 = vmul.f32 %v768, %v354
          %v770 = vmul.f32 %v768, %v355
          %v771 = vadd.f32 %v769, 0.0
          %v772 = vadd.f32 %v770, 0.0
          %s773 = sld [smem:[#allocation4 + $0x24]]
          %v774 = vstv %s773
          %v775 = vmul.f32 %v774, %v371
          %v776 = vmul.f32 %v774, %v372
          %v777 = vadd.f32 %v771, %v775
          %v778 = vadd.f32 %v772, %v776
          %s779 = sld [smem:[#allocation4 + $0x25]]
          %v780 = vstv %s779
          %v781 = vmul.f32 %v780, %v388
          %v782 = vmul.f32 %v780, %v389
          %v783 = vadd.f32 %v777, %v781
          %v784 = vadd.f32 %v778, %v782
          %s785 = sld [smem:[#allocation4 + $0x26]]
          %v786 = vstv %s785
          %v787 = vmul.f32 %v786, %v294
          %v788 = vmul.f32 %v786, %v295
          %v789 = vadd.f32 %v783, %v787
          %v790 = vadd.f32 %v784, %v788
          %s791 = sld [smem:[#allocation4 + $0x27]]
          %v792 = vstv %s791
          %v793 = vmul.f32 %v792, %v405
          %v794 = vmul.f32 %v792, %v406
          %v795 = vadd.f32 %v789, %v793
          %v796 = vadd.f32 %v790, %v794
          %s797 = sld [smem:[#allocation4 + $0x28]]
          %v798 = vstv %s797
          %v799 = vmul.f32 %v798, %v422
          %v800 = vmul.f32 %v798, %v423
          %v801 = vadd.f32 %v795, %v799
          %v802 = vadd.f32 %v796, %v800
          %s803 = sld [smem:[#allocation4 + $0x29]]
          %v804 = vstv %s803
          %v805 = vmul.f32 %v804, %v439
          %v806 = vmul.f32 %v804, %v440
          %v807 = vadd.f32 %v801, %v805
          %v808 = vadd.f32 %v802, %v806
          %811 = vrot.lane.b32.xlu0 %v807, 96
          %v812 = vpop.permute.xlu0 %811
          %813 = vrot.lane.b32.xlu0 %v808, 96
          %v814 = vpop.permute.xlu0 %813
          %vm815 = vcmask 785408
          %v816 = vsel %vm815, %v812, %v814
          %v819 = vsel %vm815, %v814, 0.0
          %v820 = vadd.f32 %v765, %v816
          %v821 = vadd.f32 %v766, %v819
          %s822 = sld [smem:[#allocation4 + $0x2a]]
          %v823 = vstv %s822
          %v824 = vmul.f32 %v823, %v354
          %v825 = vmul.f32 %v823, %v355
          %v826 = vadd.f32 %v824, 0.0
          %v827 = vadd.f32 %v825, 0.0
          %s828 = sld [smem:[#allocation4 + $0x2b]]
          %v829 = vstv %s828
          %v830 = vmul.f32 %v829, %v371
          %v831 = vmul.f32 %v829, %v372
          %v832 = vadd.f32 %v826, %v830
          %v833 = vadd.f32 %v827, %v831
          %s834 = sld [smem:[#allocation4 + $0x2c]]
          %v835 = vstv %s834
          %v836 = vmul.f32 %v835, %v388
          %v837 = vmul.f32 %v835, %v389
          %v838 = vadd.f32 %v832, %v836
          %v839 = vadd.f32 %v833, %v837
          %s840 = sld [smem:[#allocation4 + $0x2d]]
          %v841 = vstv %s840
          %v842 = vmul.f32 %v841, %v294
          %v843 = vmul.f32 %v841, %v295
          %v844 = vadd.f32 %v838, %v842
          %v845 = vadd.f32 %v839, %v843
          %s846 = sld [smem:[#allocation4 + $0x2e]]
          %v847 = vstv %s846
          %v848 = vmul.f32 %v847, %v405
          %v849 = vmul.f32 %v847, %v406
          %v850 = vadd.f32 %v844, %v848
          %v851 = vadd.f32 %v845, %v849
          %s852 = sld [smem:[#allocation4 + $0x2f]]
          %v853 = vstv %s852
          %v854 = vmul.f32 %v853, %v422
          %v855 = vmul.f32 %v853, %v423
          %v856 = vadd.f32 %v850, %v854
          %v857 = vadd.f32 %v851, %v855
          %s858 = sld [smem:[#allocation4 + $0x30]]
          %v859 = vstv %s858
          %v860 = vmul.f32 %v859, %v439
          %v861 = vmul.f32 %v859, %v440
          %v862 = vadd.f32 %v856, %v860
          %v863 = vadd.f32 %v857, %v861
          %866 = vrot.lane.b32.xlu0 %v862, 80
          %v867 = vpop.permute.xlu0 %866
          %868 = vrot.lane.b32.xlu0 %v863, 80
          %v869 = vpop.permute.xlu0 %868
          %vm870 = vcmask 654336
          %v871 = vsel %vm870, %v867, %v869
          %v874 = vsel %vm870, %v869, 0.0
          %v875 = vadd.f32 %v820, %v871
          %v876 = vadd.f32 %v821, %v874
          %s877 = sld [smem:[#allocation4 + $0x31]]
          %v878 = vstv %s877
          %v879 = vmul.f32 %v878, %v451
          %v880 = vmul.f32 %v878, %v452
          %v881 = vadd.f32 %v879, 0.0
          %v882 = vadd.f32 %v880, 0.0
          %s883 = sld [smem:[#allocation4 + $0x32]]
          %v884 = vstv %s883
          %v885 = vmul.f32 %v884, %v461
          %v886 = vmul.f32 %v884, %v462
          %v887 = vadd.f32 %v881, %v885
          %v888 = vadd.f32 %v882, %v886
          %s889 = sld [smem:[#allocation4 + $0x33]]
          %v890 = vstv %s889
          %v891 = vmul.f32 %v890, %v471
          %v892 = vmul.f32 %v890, %v472
          %v893 = vadd.f32 %v887, %v891
          %v894 = vadd.f32 %v888, %v892
          %s895 = sld [smem:[#allocation4 + $0x34]]
          %v896 = vstv %s895
          %v897 = vmul.f32 %v896, %v303
          %v898 = vmul.f32 %v896, %v309
          %v899 = vadd.f32 %v893, %v897
          %v900 = vadd.f32 %v894, %v898
          %s901 = sld [smem:[#allocation4 + $0x35]]
          %v902 = vstv %s901
          %v903 = vmul.f32 %v902, %v481
          %v904 = vmul.f32 %v902, %v482
          %v905 = vadd.f32 %v899, %v903
          %v906 = vadd.f32 %v900, %v904
          %s907 = sld [smem:[#allocation4 + $0x36]]
          %v908 = vstv %s907
          %v909 = vmul.f32 %v908, %v491
          %v910 = vmul.f32 %v908, %v492
          %v911 = vadd.f32 %v905, %v909
          %v912 = vadd.f32 %v906, %v910
          %s913 = sld [smem:[#allocation4 + $0x37]]
          %v914 = vstv %s913
          %v915 = vmul.f32 %v914, %v501
          %v916 = vmul.f32 %v914, %v502
          %v917 = vadd.f32 %v911, %v915
          %v918 = vadd.f32 %v912, %v916
          %921 = vrot.lane.b32.xlu0 %v917, 48
          %v922 = vpop.permute.xlu0 %921
          %923 = vrot.lane.b32.xlu0 %v918, 48
          %v924 = vpop.permute.xlu0 %923
          %v925 = vsel %vm551, %v922, %v924
          %v928 = vsel %vm551, 0.0, %v922
          %v929 = vadd.f32 %v875, %v928
          %v930 = vadd.f32 %v876, %v925
          %s931 = sld [smem:[#allocation4 + $0x38]]
          %v932 = vstv %s931
          %v933 = vmul.f32 %v932, %v451
          %v934 = vmul.f32 %v932, %v452
          %v935 = vadd.f32 %v933, 0.0
          %v936 = vadd.f32 %v934, 0.0
          %s937 = sld [smem:[#allocation4 + $0x39]]
          %v938 = vstv %s937
          %v939 = vmul.f32 %v938, %v461
          %v940 = vmul.f32 %v938, %v462
          %v941 = vadd.f32 %v935, %v939
          %v942 = vadd.f32 %v936, %v940
          %s943 = sld [smem:[#allocation4 + $0x3a]]
          %v944 = vstv %s943
          %v945 = vmul.f32 %v944, %v471
          %v946 = vmul.f32 %v944, %v472
          %v947 = vadd.f32 %v941, %v945
          %v948 = vadd.f32 %v942, %v946
          %s949 = sld [smem:[#allocation4 + $0x3b]]
          %v950 = vstv %s949
          %v951 = vmul.f32 %v950, %v303
          %v952 = vmul.f32 %v950, %v309
          %v953 = vadd.f32 %v947, %v951
          %v954 = vadd.f32 %v948, %v952
          %s955 = sld [smem:[#allocation4 + $0x3c]]
          %v956 = vstv %s955
          %v957 = vmul.f32 %v956, %v481
          %v958 = vmul.f32 %v956, %v482
          %v959 = vadd.f32 %v953, %v957
          %v960 = vadd.f32 %v954, %v958
          %s961 = sld [smem:[#allocation4 + $0x3d]]
          %v962 = vstv %s961
          %v963 = vmul.f32 %v962, %v491
          %v964 = vmul.f32 %v962, %v492
          %v965 = vadd.f32 %v959, %v963
          %v966 = vadd.f32 %v960, %v964
          %s967 = sld [smem:[#allocation4 + $0x3e]]
          %v968 = vstv %s967
          %v969 = vmul.f32 %v968, %v501
          %v970 = vmul.f32 %v968, %v502
          %v971 = vadd.f32 %v965, %v969
          %v972 = vadd.f32 %v966, %v970
          %975 = vrot.lane.b32.xlu0 %v971, 32
          %v976 = vpop.permute.xlu0 %975
          %977 = vrot.lane.b32.xlu0 %v972, 32
          %v978 = vpop.permute.xlu0 %977
          %v979 = vsel %vm606, %v976, %v978
          %v982 = vsel %vm606, 0.0, %v976
          %v983 = vadd.f32 %v929, %v982
          %v984 = vadd.f32 %v930, %v979
          %s985 = sld [smem:[#allocation4 + $0x3f]]
          %v986 = vstv %s985
          %v987 = vmul.f32 %v986, %v451
          %v988 = vmul.f32 %v986, %v452
          %v989 = vadd.f32 %v987, 0.0
          %v990 = vadd.f32 %v988, 0.0
          %s991 = sld [smem:[#allocation4 + $0x40]]
          %v992 = vstv %s991
          %v993 = vmul.f32 %v992, %v461
          %v994 = vmul.f32 %v992, %v462
          %v995 = vadd.f32 %v989, %v993
          %v996 = vadd.f32 %v990, %v994
          %s997 = sld [smem:[#allocation4 + $0x41]]
          %v998 = vstv %s997
          %v999 = vmul.f32 %v998, %v471
          %v1000 = vmul.f32 %v998, %v472
          %v1001 = vadd.f32 %v995, %v999
          %v1002 = vadd.f32 %v996, %v1000
          %s1003 = sld [smem:[#allocation4 + $0x42]]
          %v1004 = vstv %s1003
          %v1005 = vmul.f32 %v1004, %v303
          %v1006 = vmul.f32 %v1004, %v309
          %v1007 = vadd.f32 %v1001, %v1005
          %v1008 = vadd.f32 %v1002, %v1006
          %s1009 = sld [smem:[#allocation4 + $0x43]]
          %v1010 = vstv %s1009
          %v1011 = vmul.f32 %v1010, %v481
          %v1012 = vmul.f32 %v1010, %v482
          %v1013 = vadd.f32 %v1007, %v1011
          %v1014 = vadd.f32 %v1008, %v1012
          %s1015 = sld [smem:[#allocation4 + $0x44]]
          %v1016 = vstv %s1015
          %v1017 = vmul.f32 %v1016, %v491
          %v1018 = vmul.f32 %v1016, %v492
          %v1019 = vadd.f32 %v1013, %v1017
          %v1020 = vadd.f32 %v1014, %v1018
          %s1021 = sld [smem:[#allocation4 + $0x45]]
          %v1022 = vstv %s1021
          %v1023 = vmul.f32 %v1022, %v501
          %v1024 = vmul.f32 %v1022, %v502
          %v1025 = vadd.f32 %v1019, %v1023
          %v1026 = vadd.f32 %v1020, %v1024
          %1029 = vrot.lane.b32.xlu0 %v1025, 16
          %v1030 = vpop.permute.xlu0 %1029
          %1031 = vrot.lane.b32.xlu0 %v1026, 16
          %v1032 = vpop.permute.xlu0 %1031
          %v1033 = vsel %vm661, %v1030, %v1032
          %v1036 = vsel %vm661, 0.0, %v1030
          %v1037 = vadd.f32 %v983, %v1036
          %v1038 = vadd.f32 %v984, %v1033
          %s1039 = sld [smem:[#allocation4 + $0x46]]
          %v1040 = vstv %s1039
          %v1041 = vmul.f32 %v1040, %v451
          %v1042 = vmul.f32 %v1040, %v452
          %v1043 = vadd.f32 %v1041, 0.0
          %v1044 = vadd.f32 %v1042, 0.0
          %s1045 = sld [smem:[#allocation4 + $0x47]]
          %v1046 = vstv %s1045
          %v1047 = vmul.f32 %v1046, %v461
          %v1048 = vmul.f32 %v1046, %v462
          %v1049 = vadd.f32 %v1043, %v1047
          %v1050 = vadd.f32 %v1044, %v1048
          %s1051 = sld [smem:[#allocation4 + $0x48]]
          %v1052 = vstv %s1051
          %v1053 = vmul.f32 %v1052, %v471
          %v1054 = vmul.f32 %v1052, %v472
          %v1055 = vadd.f32 %v1049, %v1053
          %v1056 = vadd.f32 %v1050, %v1054
          %s1057 = sld [smem:[#allocation4 + $0x49]]
          %v1058 = vstv %s1057
          %v1059 = vmul.f32 %v1058, %v303
          %v1060 = vmul.f32 %v1058, %v309
          %v1061 = vadd.f32 %v1055, %v1059
          %v1062 = vadd.f32 %v1056, %v1060
          %s1063 = sld [smem:[#allocation4 + $0x4a]]
          %v1064 = vstv %s1063
          %v1065 = vmul.f32 %v1064, %v481
          %v1066 = vmul.f32 %v1064, %v482
          %v1067 = vadd.f32 %v1061, %v1065
          %v1068 = vadd.f32 %v1062, %v1066
          %s1069 = sld [smem:[#allocation4 + $0x4b]]
          %v1070 = vstv %s1069
          %v1071 = vmul.f32 %v1070, %v491
          %v1072 = vmul.f32 %v1070, %v492
          %v1073 = vadd.f32 %v1067, %v1071
          %v1074 = vadd.f32 %v1068, %v1072
          %s1075 = sld [smem:[#allocation4 + $0x4c]]
          %v1076 = vstv %s1075
          %v1077 = vmul.f32 %v1076, %v501
          %v1078 = vmul.f32 %v1076, %v502
          %v1079 = vadd.f32 %v1073, %v1077
          %v1080 = vadd.f32 %v1074, %v1078
          %v1081 = vadd.f32 %v1037, %v1079
          %v1082 = vadd.f32 %v1038, %v1080
          %s1083 = sld [smem:[#allocation4 + $0x4d]]
          %v1084 = vstv %s1083
          %v1085 = vmul.f32 %v1084, %v451
          %v1086 = vmul.f32 %v1084, %v452
          %v1087 = vadd.f32 %v1085, 0.0
          %v1088 = vadd.f32 %v1086, 0.0
          %s1089 = sld [smem:[#allocation4 + $0x4e]]
          %v1090 = vstv %s1089
          %v1091 = vmul.f32 %v1090, %v461
          %v1092 = vmul.f32 %v1090, %v462
          %v1093 = vadd.f32 %v1087, %v1091
          %v1094 = vadd.f32 %v1088, %v1092
          %s1095 = sld [smem:[#allocation4 + $0x4f]]
          %v1096 = vstv %s1095
          %v1097 = vmul.f32 %v1096, %v471
          %v1098 = vmul.f32 %v1096, %v472
          %v1099 = vadd.f32 %v1093, %v1097
          %v1100 = vadd.f32 %v1094, %v1098
          %s1101 = sld [smem:[#allocation4 + $0x50]]
          %v1102 = vstv %s1101
          %v1103 = vmul.f32 %v1102, %v303
          %v1104 = vmul.f32 %v1102, %v309
          %v1105 = vadd.f32 %v1099, %v1103
          %v1106 = vadd.f32 %v1100, %v1104
          %s1107 = sld [smem:[#allocation4 + $0x51]]
          %v1108 = vstv %s1107
          %v1109 = vmul.f32 %v1108, %v481
          %v1110 = vmul.f32 %v1108, %v482
          %v1111 = vadd.f32 %v1105, %v1109
          %v1112 = vadd.f32 %v1106, %v1110
          %s1113 = sld [smem:[#allocation4 + $0x52]]
          %v1114 = vstv %s1113
          %v1115 = vmul.f32 %v1114, %v491
          %v1116 = vmul.f32 %v1114, %v492
          %v1117 = vadd.f32 %v1111, %v1115
          %v1118 = vadd.f32 %v1112, %v1116
          %s1119 = sld [smem:[#allocation4 + $0x53]]
          %v1120 = vstv %s1119
          %v1121 = vmul.f32 %v1120, %v501
          %v1122 = vmul.f32 %v1120, %v502
          %v1123 = vadd.f32 %v1117, %v1121
          %v1124 = vadd.f32 %v1118, %v1122
          %1127 = vrot.lane.b32.xlu0 %v1123, 112
          %v1128 = vpop.permute.xlu0 %1127
          %1129 = vrot.lane.b32.xlu0 %v1124, 112
          %v1130 = vpop.permute.xlu0 %1129
          %v1131 = vsel %vm760, %v1128, %v1130
          %v1134 = vsel %vm760, %v1130, 0.0
          %v1135 = vadd.f32 %v1081, %v1131
          %v1136 = vadd.f32 %v1082, %v1134
          %s1137 = sld [smem:[#allocation4 + $0x54]]
          %v1138 = vstv %s1137
          %v1139 = vmul.f32 %v1138, %v451
          %v1140 = vmul.f32 %v1138, %v452
          %v1141 = vadd.f32 %v1139, 0.0
          %v1142 = vadd.f32 %v1140, 0.0
          %s1143 = sld [smem:[#allocation4 + $0x55]]
          %v1144 = vstv %s1143
          %v1145 = vmul.f32 %v1144, %v461
          %v1146 = vmul.f32 %v1144, %v462
          %v1147 = vadd.f32 %v1141, %v1145
          %v1148 = vadd.f32 %v1142, %v1146
          %s1149 = sld [smem:[#allocation4 + $0x56]]
          %v1150 = vstv %s1149
          %v1151 = vmul.f32 %v1150, %v471
          %v1152 = vmul.f32 %v1150, %v472
          %v1153 = vadd.f32 %v1147, %v1151
          %v1154 = vadd.f32 %v1148, %v1152
          %s1155 = sld [smem:[#allocation4 + $0x57]]
          %v1156 = vstv %s1155
          %v1157 = vmul.f32 %v1156, %v303
          %v1158 = vmul.f32 %v1156, %v309
          %v1159 = vadd.f32 %v1153, %v1157
          %v1160 = vadd.f32 %v1154, %v1158
          %s1161 = sld [smem:[#allocation4 + $0x58]]
          %v1162 = vstv %s1161
          %v1163 = vmul.f32 %v1162, %v481
          %v1164 = vmul.f32 %v1162, %v482
          %v1165 = vadd.f32 %v1159, %v1163
          %v1166 = vadd.f32 %v1160, %v1164
          %s1167 = sld [smem:[#allocation4 + $0x59]]
          %v1168 = vstv %s1167
          %v1169 = vmul.f32 %v1168, %v491
          %v1170 = vmul.f32 %v1168, %v492
          %v1171 = vadd.f32 %v1165, %v1169
          %v1172 = vadd.f32 %v1166, %v1170
          %s1173 = sld [smem:[#allocation4 + $0x5a]]
          %v1174 = vstv %s1173
          %v1175 = vmul.f32 %v1174, %v501
          %v1176 = vmul.f32 %v1174, %v502
          %v1177 = vadd.f32 %v1171, %v1175
          %v1178 = vadd.f32 %v1172, %v1176
          %1181 = vrot.lane.b32.xlu0 %v1177, 96
          %v1182 = vpop.permute.xlu0 %1181
          %1183 = vrot.lane.b32.xlu0 %v1178, 96
          %v1184 = vpop.permute.xlu0 %1183
          %v1185 = vsel %vm815, %v1182, %v1184
          %v1188 = vsel %vm815, %v1184, 0.0
          %v1189 = vadd.f32 %v1135, %v1185
          %v1190 = vadd.f32 %v1136, %v1188
          %s1191 = sld [smem:[#allocation4 + $0x5b]]
          %v1192 = vstv %s1191
          %v1193 = vmul.f32 %v1192, %v451
          %v1194 = vmul.f32 %v1192, %v452
          %v1195 = vadd.f32 %v1193, 0.0
          %v1196 = vadd.f32 %v1194, 0.0
          %s1197 = sld [smem:[#allocation4 + $0x5c]]
          %v1198 = vstv %s1197
          %v1199 = vmul.f32 %v1198, %v461
          %v1200 = vmul.f32 %v1198, %v462
          %v1201 = vadd.f32 %v1195, %v1199
          %v1202 = vadd.f32 %v1196, %v1200
          %s1203 = sld [smem:[#allocation4 + $0x5d]]
          %v1204 = vstv %s1203
          %v1205 = vmul.f32 %v1204, %v471
          %v1206 = vmul.f32 %v1204, %v472
          %v1207 = vadd.f32 %v1201, %v1205
          %v1208 = vadd.f32 %v1202, %v1206
          %s1209 = sld [smem:[#allocation4 + $0x5e]]
          %v1210 = vstv %s1209
          %v1211 = vmul.f32 %v1210, %v303
          %v1212 = vmul.f32 %v1210, %v309
          %v1213 = vadd.f32 %v1207, %v1211
          %v1214 = vadd.f32 %v1208, %v1212
          %s1215 = sld [smem:[#allocation4 + $0x5f]]
          %v1216 = vstv %s1215
          %v1217 = vmul.f32 %v1216, %v481
          %v1218 = vmul.f32 %v1216, %v482
          %v1219 = vadd.f32 %v1213, %v1217
          %v1220 = vadd.f32 %v1214, %v1218
          %s1221 = sld [smem:[#allocation4 + $0x60]]
          %v1222 = vstv %s1221
          %v1223 = vmul.f32 %v1222, %v491
          %v1224 = vmul.f32 %v1222, %v492
          %v1225 = vadd.f32 %v1219, %v1223
          %v1226 = vadd.f32 %v1220, %v1224
          %s1227 = sld [smem:[#allocation4 + $0x61]]
          %v1228 = vstv %s1227
          %v1229 = vmul.f32 %v1228, %v501
          %v1230 = vmul.f32 %v1228, %v502
          %v1231 = vadd.f32 %v1225, %v1229
          %v1232 = vadd.f32 %v1226, %v1230
          %1235 = vrot.lane.b32.xlu0 %v1231, 80
          %v1236 = vpop.permute.xlu0 %1235
          %1237 = vrot.lane.b32.xlu0 %v1232, 80
          %v1238 = vpop.permute.xlu0 %1237
          %v1239 = vsel %vm870, %v1236, %v1238
          %v1242 = vsel %vm870, %v1238, 0.0
          %v1243 = vadd.f32 %v1189, %v1239
          %v1244 = vadd.f32 %v1190, %v1242
          %v1245 = vsub.f32 0.0, %v1243
          %v1246 = vsub.f32 0.0, %v1244
          %v1247 = vmul.f32 %v1245, 1.442695
          %v1248 = vpow.pop %v1247
          %v1249 = vmul.f32 %v1246, 1.442695
          %v1250 = vpow.pop %v1249
          %v1251 = vadd.f32 %v1248, 1.0
          %v1252 = vadd.f32 %v1250, 1.0
          %v1253 = vrcp.pop %v1251
          %v1254 = vrcp.pop %v1252
          %v1257 = vcombine.low %v1253, %v1254
          %v1259 = vunpack.c.l.s4 1966171168
          %v1260 = vunpack.c.0.s8 %v1259
          %v1261 = vlaneseq
          %v1262 = vshrl.u32 %v1261, 7
          %v1263 = vsub.s32 %v1260, %v1262
          %v1264 = vrot.slane %v1257, %v1263
          %v1266 = vunpack.c.l.s4 1966171168
          %v1267 = vunpack.c.0.s8 %v1266
          %v1268 = vlaneseq
          %v1269 = vshrl.u32 %v1268, 7
          %v1270 = vsub.s32 %v1267, %v1269
          %v1271 = vrot.slane %v1264, %v1270
          %1273 = vst.msk [vmem:[%s187] sm:$0x3] %vm238, %v1271
        $region44: #{tpu_custom_call.1} parent=27 // pred_fallthru
          _
        %s1274 = sand.u32 %s89, 1
        %s1275 = scalar_lea.sflag [#allocation6], %s1274
        %s1276 = sand.u32 %s89, 1
        %s1277 = smul.addr %s1276, 2
        %s1278 = scalar_lea.vmem [#allocation9], %s1277
        // Predicated region
        $region45: #{tpu_custom_call.1} parent=27 // pred_check
          %p1279 = pneg %p99
        $region46: #{tpu_custom_call.1} parent=27 // pred_check_branch
          %1281 = sbr.rel (%p1279) target = $region48
        $region47: #{tpu_custom_call.1} parent=27 // pred_region
          %s1283 = ssub.s32 32, 32
          %1284 = vsyncadd %s1275, %s1283
          %s1285 = smul.addr %s24, 2
          %s1286 = smul.addr %s1285, 16
          %s1287 = scalar_lea.hbm %s2, %s1286
          %s1289 = sshll.u32 %s1278, 4
          %s1290 = int_to_ptr.vmem [resolvable:$true] %s1289
          %1292 = dma.vmem_to_hbm [thread:$0]  %s1290, 32, %s1287, %s1275
        $region48: #{tpu_custom_call.1} parent=27 // pred_fallthru
          _
      $region28: #{tpu_custom_call.1} parent=5 // pred_fallthru
        _
      %p1293 = scmp.le.s32.totalorder 2, %s15
      // Predicated region
      $region49: #{tpu_custom_call.1} parent=5 // pred_check
        %p1294 = pneg %p1293
      $region50: #{tpu_custom_call.1} parent=5 // pred_check_branch
        %1296 = sbr.rel (%p1294) target = $region52
      $region51: #{tpu_custom_call.1} parent=5 // pred_region
        %s1297 = ssub.s32 %s15, 2
        // Predicated region
        $region53: #{tpu_custom_call.1} parent=51 // pred_check
          %p1298 = pneg %p105
        $region54: #{tpu_custom_call.1} parent=51 // pred_check_branch
          %1300 = sbr.rel (%p1298) target = $region56
        $region55: #{tpu_custom_call.1} parent=51 // pred_region
          %s1301 = sand.u32 %s90, 1
          %s1302 = scalar_lea.sflag [#allocation6], %s1301
          %s1303 = sand.u32 %s90, 1
          %s1304 = smul.addr %s1303, 2
          %s1305 = scalar_lea.vmem [#allocation9], %s1304
          %1306 = dma.done %s1302, 32
        $region56: #{tpu_custom_call.1} parent=51 // pred_fallthru
          _
      $region52: #{tpu_custom_call.1} parent=5 // pred_fallthru
        _
    $region6: #{tpu_custom_call.1} parent=1 // loop_footer
      %s19 = sadd.s32 1, %s15
    $region7: #{tpu_custom_call.1} parent=1 // loop_footer_branch
      %14 = sbr.rel target = $region3
    $region8: #{tpu_custom_call.1} parent=1 // loop_exit
      _
    %1307 = vsyncpa [#allocation5], 1
    %s1308 = scalar_lea.sflag [#allocation5], 1
    %1309 = vsyncpa %s1308, 1
    %1310 = vsyncpa [#allocation6], 1
    %s1311 = scalar_lea.sflag [#allocation6], 1
    %1312 = vsyncpa %s1311, 1
    %1313 = vsyncpa [#allocation7], 1
    %s1314 = scalar_lea.sflag [#allocation7], 1
    %1315 = vsyncpa %s1314, 1

</llo_original>
